<compile_context>
chip_gen: v5e
topology: v5e:2x2
jax: 0.10.0
libtpu: 0.0.40
codegen_flags: <defaults>
</compile_context>

<pallas_src>
import jax
import jax.numpy as jnp
from jax.experimental import pallas as pl
from jax.experimental.pallas import tpu as pltpu  # noqa: F401  (TPU backend)

# ---------------- model dimensions (small, synthetic "mini-BERT") ------------
B = 2            # batch
S = 8            # sequence length
H = 32           # hidden size
NUM_HEADS = 2
HEAD_DIM = H // NUM_HEADS
INTER = 64       # FFN intermediate size
NUM_LAYERS = 2
NUM_LABELS = 3   # config['num_labels']
VOCAB = 50
TYPE_VOCAB = 2
MAX_POS = 16
LN_EPS = 1e-12

MM_DTYPE = jnp.bfloat16   # MXU operand dtype; accumulation stays f32


# ---------------- in-kernel math helpers (all f32) ---------------------------
def _ln(x, g, b):
    mu = jnp.mean(x, axis=-1, keepdims=True)
    var = jnp.mean((x - mu) ** 2, axis=-1, keepdims=True)
    return (x - mu) * jax.lax.rsqrt(var + LN_EPS) * g + b


def _gelu(x):
    # TODO(synk): BERT uses erf-GELU; tanh approximation is numerically close.
    return 0.5 * x * (1.0 + jnp.tanh(0.7978845608028654 * (x + 0.044715 * x * x * x)))


def _log_softmax(x):
    m = jnp.max(x, axis=-1, keepdims=True)
    s = x - m
    return s - jnp.log(jnp.sum(jnp.exp(s), axis=-1, keepdims=True))


# ---------------- single fused forward kernel --------------------------------
def fused_forward_kernel(emb_ref, mask_ref, emb_g_ref, emb_b_ref,
                         wqkv_ref, bqkv_ref, wo_ref, bo_ref,
                         ln1g_ref, ln1b_ref,
                         wi_ref, bi_ref, wo2_ref, bo2_ref,
                         ln2g_ref, ln2b_ref,
                         pool_w_ref, pool_b_ref, head_w_ref, head_b_ref,
                         sent_ref, dom_ref):
    # Residual stream kept as [B*S, H] in f32 (lane-dense 2D matmuls).
    x = _ln(emb_ref[...].astype(jnp.float32), emb_g_ref[...], emb_b_ref[...])

    mask = mask_ref[...].astype(jnp.float32)                 # [B, 1, S] additive
    mask_bh = jnp.concatenate([mask] * NUM_HEADS, axis=0)    # [NH*B, 1, S]
    scale = HEAD_DIM ** -0.5

    for l in range(NUM_LAYERS):          # static unroll; weights indexed at axis 0
        # ---- fused QKV projection: one MXU push with a 3H-wide output ----
        qkv = jnp.dot(x.astype(MM_DTYPE), wqkv_ref[l],
                      preferred_element_type=jnp.float32) + bqkv_ref[l]   # [B*S, 3H]
        qkv3 = qkv.reshape(B, S, 3 * H)                                   # tile-aligned

        # ---- all heads at once: fold heads into the batch dimension ----
        qh = jnp.concatenate(
            [qkv3[:, :, h * HEAD_DIM:(h + 1) * HEAD_DIM]
             for h in range(NUM_HEADS)], axis=0)                          # [NH*B, S, DH]
        kh = jnp.concatenate(
            [qkv3[:, :, H + h * HEAD_DIM:H + (h + 1) * HEAD_DIM]
             for h in range(NUM_HEADS)], axis=0)
        vh = jnp.concatenate(
            [qkv3[:, :, 2 * H + h * HEAD_DIM:2 * H + (h + 1) * HEAD_DIM]
             for h in range(NUM_HEADS)], axis=0)

        scores = jnp.einsum('bqd,bkd->bqk',
                            qh.astype(MM_DTYPE), kh.astype(MM_DTYPE),
                            preferred_element_type=jnp.float32) * scale + mask_bh
        scores = scores - jnp.max(scores, axis=-1, keepdims=True)
        probs = jnp.exp(scores)
        probs = probs * pl.reciprocal(jnp.sum(probs, axis=-1, keepdims=True),
                                      approx=True)
        ctx = jnp.einsum('bqk,bkd->bqd',
                         probs.astype(MM_DTYPE), vh.astype(MM_DTYPE),
                         preferred_element_type=jnp.float32)              # [NH*B, S, DH]

        # un-fold heads back into the hidden dim and project
        ctx_full = jnp.concatenate(
            [ctx[h * B:(h + 1) * B] for h in range(NUM_HEADS)], axis=-1)  # [B, S, H]
        attn = jnp.dot(ctx_full.reshape(B * S, H).astype(MM_DTYPE), wo_ref[l],
                       preferred_element_type=jnp.float32) + bo_ref[l]

        x1 = _ln(x + attn, ln1g_ref[l], ln1b_ref[l])

        hmid = _gelu(jnp.dot(x1.astype(MM_DTYPE), wi_ref[l],
                             preferred_element_type=jnp.float32) + bi_ref[l])
        ffn = jnp.dot(hmid.astype(MM_DTYPE), wo2_ref[l],
                      preferred_element_type=jnp.float32) + bo2_ref[l]
        x = _ln(x1 + ffn, ln2g_ref[l], ln2b_ref[l])

    # ---- pooler + fused classifier heads ----
    # [CLS] rows are at row offsets b*S (multiples of the 8-sublane tile).
    cls = jnp.concatenate([x[b * S:b * S + 1, :] for b in range(B)], axis=0)  # [B, H]
    pooled = jnp.tanh(jnp.dot(cls.astype(MM_DTYPE), pool_w_ref[...],
                              preferred_element_type=jnp.float32) + pool_b_ref[...])
    # nn.Dropout (eval) and GradientReversalFn.forward are identities.
    logits = jnp.dot(pooled.astype(MM_DTYPE), head_w_ref[...],
                     preferred_element_type=jnp.float32) + head_b_ref[...]    # [B, NL+2]
    sent_ref[...] = _log_softmax(logits[:, :NUM_LABELS]).astype(sent_ref.dtype)
    dom_ref[...] = _log_softmax(logits[:, NUM_LABELS:]).astype(dom_ref.dtype)


# ---------------- wrapper -----------------------------------------------------
def forward(params, input_ids, attention_mask, token_type_ids, grl_lambda=1.0):
    del grl_lambda  # only affects the backward of GradientReversalFn
    b_, s_ = input_ids.shape

    # ---- embeddings (table gathers: plain JAX glue) ----
    pos_ids = jnp.arange(s_, dtype=jnp.int32)
    emb = (params["word_emb"][input_ids]
           + params["pos_emb"][pos_ids][None, :, :]
           + params["type_emb"][token_type_ids])                  # [B, S, H] f32
    # TODO(synk): embedding-level dropout omitted (eval-mode identity).

    # additive attention mask: 0 where attended, -1e9 where masked
    add_mask = ((1.0 - attention_mask.astype(jnp.float32)) * -1e9).reshape(b_, 1, s_)

    sent, dom = pl.pallas_call(
        fused_forward_kernel,
        out_shape=(jax.ShapeDtypeStruct((b_, NUM_LABELS), jnp.float32),
                   jax.ShapeDtypeStruct((b_, 2), jnp.float32)),
    )(emb.reshape(b_ * s_, H), add_mask,
      params["emb_ln_g"], params["emb_ln_b"],
      params["wqkv"], params["bqkv"], params["wo"], params["bo"],
      params["ln1_g"], params["ln1_b"],
      params["wi"], params["bi"], params["wo2"], params["bo2"],
      params["ln2_g"], params["ln2_b"],
      params["pool_w"], params["pool_b"], params["head_w"], params["head_b"])
    return sent, dom


# ---------------- deterministic parameter init (pre-fused / pre-stacked) -------
def init_params(key):
    def normal(k, shape):
        return 0.02 * jax.random.normal(k, shape, dtype=jnp.float32)

    keys = iter(jax.random.split(key, 64))
    params = {
        "word_emb": normal(next(keys), (VOCAB, H)),
        "pos_emb": normal(next(keys), (MAX_POS, H)),
        "type_emb": normal(next(keys), (TYPE_VOCAB, H)),
        "emb_ln_g": jnp.ones((1, H), jnp.float32),
        "emb_ln_b": jnp.zeros((1, H), jnp.float32),
        "pool_w": normal(next(keys), (H, H)).astype(MM_DTYPE),
        "pool_b": jnp.zeros((1, H), jnp.float32),
    }
    # sentiment + domain classifier heads fused column-wise: [H, NUM_LABELS + 2]
    sent_w = normal(next(keys), (H, NUM_LABELS))
    dom_w = normal(next(keys), (H, 2))
    params["head_w"] = jnp.concatenate([sent_w, dom_w], axis=1).astype(MM_DTYPE)
    params["head_b"] = jnp.zeros((1, NUM_LABELS + 2), jnp.float32)

    # per-layer encoder weights, stacked along a leading [NUM_LAYERS, ...] axis;
    # Q/K/V fused column-wise into one [H, 3H] projection per layer.
    wqkv, wo, wi, wo2 = [], [], [], []
    for _ in range(NUM_LAYERS):
        wq = normal(next(keys), (H, H))
        wk = normal(next(keys), (H, H))
        wv = normal(next(keys), (H, H))
        wqkv.append(jnp.concatenate([wq, wk, wv], axis=1))
        wo.append(normal(next(keys), (H, H)))
        wi.append(normal(next(keys), (H, INTER)))
        wo2.append(normal(next(keys), (INTER, H)))
    params["wqkv"] = jnp.stack(wqkv).astype(MM_DTYPE)                 # [L, H, 3H]
    params["bqkv"] = jnp.zeros((NUM_LAYERS, 1, 3 * H), jnp.float32)
    params["wo"] = jnp.stack(wo).astype(MM_DTYPE)                     # [L, H, H]
    params["bo"] = jnp.zeros((NUM_LAYERS, 1, H), jnp.float32)
    params["ln1_g"] = jnp.ones((NUM_LAYERS, 1, H), jnp.float32)
    params["ln1_b"] = jnp.zeros((NUM_LAYERS, 1, H), jnp.float32)
    params["wi"] = jnp.stack(wi).astype(MM_DTYPE)                     # [L, H, INTER]
    params["bi"] = jnp.zeros((NUM_LAYERS, 1, INTER), jnp.float32)
    params["wo2"] = jnp.stack(wo2).astype(MM_DTYPE)                   # [L, INTER, H]
    params["bo2"] = jnp.zeros((NUM_LAYERS, 1, H), jnp.float32)
    params["ln2_g"] = jnp.ones((NUM_LAYERS, 1, H), jnp.float32)
    params["ln2_b"] = jnp.zeros((NUM_LAYERS, 1, H), jnp.float32)
    return params


# ---------------- main ----------------------------------------------------------
if __name__ == "__main__":
    root = jax.random.PRNGKey(0)
    k_params, k_ids = jax.random.split(root)

    params = init_params(k_params)
    input_ids = jax.random.randint(k_ids, (B, S), 0, VOCAB, dtype=jnp.int32)
    token_type_ids = jnp.zeros((B, S), jnp.int32)
    attention_mask = jnp.ones((B, S), jnp.float32).at[1, S - 2:].set(0.0)  # pad tail of ex. 1

    fwd = jax.jit(forward)
    sentiment_pred, domain_pred = fwd(params, input_ids, attention_mask,
                                      token_type_ids, 1.0)
    jax.block_until_ready((sentiment_pred, domain_pred))

    assert sentiment_pred.shape == (B, NUM_LABELS)
    assert domain_pred.shape == (B, 2)
    # log-softmax rows should exponentiate to ~1 and be finite
    assert jnp.allclose(jnp.exp(sentiment_pred).sum(-1), 1.0, atol=1e-4)
    assert jnp.allclose(jnp.exp(domain_pred).sum(-1), 1.0, atol=1e-4)
    assert bool(jnp.isfinite(sentiment_pred).all())
    assert bool(jnp.isfinite(domain_pred).all())

    print("KERNEL_OK")
</pallas_src>

<mosaic_0001>
module attributes {stable_mosaic.version = 11 : i64} {
  func.func @fused_forward_kernel(%arg0: memref<16x32xf32, #tpu.memory_space<vmem>>, %arg1: memref<2x1x8xf32, #tpu.memory_space<vmem>>, %arg2: memref<1x32xf32, #tpu.memory_space<vmem>>, %arg3: memref<1x32xf32, #tpu.memory_space<vmem>>, %arg4: memref<2x32x96xbf16, #tpu.memory_space<vmem>>, %arg5: memref<2x1x96xf32, #tpu.memory_space<vmem>>, %arg6: memref<2x32x32xbf16, #tpu.memory_space<vmem>>, %arg7: memref<2x1x32xf32, #tpu.memory_space<vmem>>, %arg8: memref<2x1x32xf32, #tpu.memory_space<vmem>>, %arg9: memref<2x1x32xf32, #tpu.memory_space<vmem>>, %arg10: memref<2x32x64xbf16, #tpu.memory_space<vmem>>, %arg11: memref<2x1x64xf32, #tpu.memory_space<vmem>>, %arg12: memref<2x64x32xbf16, #tpu.memory_space<vmem>>, %arg13: memref<2x1x32xf32, #tpu.memory_space<vmem>>, %arg14: memref<2x1x32xf32, #tpu.memory_space<vmem>>, %arg15: memref<2x1x32xf32, #tpu.memory_space<vmem>>, %arg16: memref<32x32xbf16, #tpu.memory_space<vmem>>, %arg17: memref<1x32xf32, #tpu.memory_space<vmem>>, %arg18: memref<32x5xbf16, #tpu.memory_space<vmem>>, %arg19: memref<1x5xf32, #tpu.memory_space<vmem>>, %arg20: memref<2x3xf32, #tpu.memory_space<vmem>>, %arg21: memref<2x2xf32, #tpu.memory_space<vmem>>) attributes {dimension_semantics = [], scalar_prefetch = 0 : i64, scratch_operands = 0 : i64, tpu.core_type = #tpu.core_type<tc>} {
    %c0 = arith.constant 0 : index
    %c0_0 = arith.constant 0 : index
    %0 = vector.load %arg0[%c0, %c0_0] : memref<16x32xf32, #tpu.memory_space<vmem>>, vector<16x32xf32>
    %c0_1 = arith.constant 0 : index
    %c0_2 = arith.constant 0 : index
    %1 = vector.load %arg2[%c0_1, %c0_2] : memref<1x32xf32, #tpu.memory_space<vmem>>, vector<1x32xf32>
    %c0_3 = arith.constant 0 : index
    %c0_4 = arith.constant 0 : index
    %2 = vector.load %arg3[%c0_3, %c0_4] : memref<1x32xf32, #tpu.memory_space<vmem>>, vector<1x32xf32>
    %cst = arith.constant dense<0.000000e+00> : vector<16xf32>
    %3 = vector.multi_reduction <add>, %0, %cst [1] : vector<16x32xf32> to vector<16xf32>
    %4 = vector.shape_cast %3 : vector<16xf32> to vector<16x1xf32>
    %cst_5 = arith.constant 3.200000e+01 : f32
    %5 = vector.broadcast %cst_5 : f32 to vector<16x1xf32>
    %6 = arith.divf %4, %5 : vector<16x1xf32>
    %7 = vector.broadcast %6 : vector<16x1xf32> to vector<16x32xf32>
    %8 = arith.subf %0, %7 : vector<16x32xf32>
    %9 = arith.mulf %8, %8 : vector<16x32xf32>
    %cst_6 = arith.constant dense<0.000000e+00> : vector<16xf32>
    %10 = vector.multi_reduction <add>, %9, %cst_6 [1] : vector<16x32xf32> to vector<16xf32>
    %11 = vector.shape_cast %10 : vector<16xf32> to vector<16x1xf32>
    %cst_7 = arith.constant 3.200000e+01 : f32
    %12 = vector.broadcast %cst_7 : f32 to vector<16x1xf32>
    %13 = arith.divf %11, %12 : vector<16x1xf32>
    %14 = vector.broadcast %6 : vector<16x1xf32> to vector<16x32xf32>
    %15 = arith.subf %0, %14 : vector<16x32xf32>
    %cst_8 = arith.constant 9.99999996E-13 : f32
    %16 = vector.broadcast %cst_8 : f32 to vector<16x1xf32>
    %17 = arith.addf %13, %16 : vector<16x1xf32>
    %18 = math.rsqrt %17 : vector<16x1xf32>
    %19 = vector.broadcast %18 : vector<16x1xf32> to vector<16x32xf32>
    %20 = arith.mulf %15, %19 : vector<16x32xf32>
    %21 = vector.broadcast %1 : vector<1x32xf32> to vector<16x32xf32>
    %22 = arith.mulf %20, %21 : vector<16x32xf32>
    %23 = vector.broadcast %2 : vector<1x32xf32> to vector<16x32xf32>
    %24 = arith.addf %22, %23 : vector<16x32xf32>
    %c0_9 = arith.constant 0 : index
    %c0_10 = arith.constant 0 : index
    %c0_11 = arith.constant 0 : index
    %25 = vector.load %arg1[%c0_9, %c0_10, %c0_11] : memref<2x1x8xf32, #tpu.memory_space<vmem>>, vector<2x1x8xf32>
    %26 = tpu.concatenate %25, %25 in 0 : vector<2x1x8xf32>, vector<2x1x8xf32> -> vector<4x1x8xf32>
    %27 = arith.truncf %24 : vector<16x32xf32> to vector<16x32xbf16>
    %c0_12 = arith.constant 0 : index
    %c0_13 = arith.constant 0 : index
    %c0_14 = arith.constant 0 : index
    %28 = vector.load %arg4[%c0_12, %c0_13, %c0_14] : memref<2x32x96xbf16, #tpu.memory_space<vmem>>, vector<1x32x96xbf16>
    %29 = vector.shape_cast %28 : vector<1x32x96xbf16> to vector<32x96xbf16>
    %cst_15 = arith.constant dense<0.000000e+00> : vector<16x96xf32>
    %30 = tpu.matmul %27, %29, %cst_15 {dimension_numbers = #tpu.dot_dimension_numbers<[1], [0], [0], [1], [0, 0, 1, 1], [], []>} : vector<16x32xbf16>, vector<32x96xbf16>, vector<16x96xf32> -> vector<16x96xf32>
    %c0_16 = arith.constant 0 : index
    %c0_17 = arith.constant 0 : index
    %c0_18 = arith.constant 0 : index
    %31 = vector.load %arg5[%c0_16, %c0_17, %c0_18] : memref<2x1x96xf32, #tpu.memory_space<vmem>>, vector<1x1x96xf32>
    %32 = vector.shape_cast %31 : vector<1x1x96xf32> to vector<1x96xf32>
    %33 = vector.broadcast %32 : vector<1x96xf32> to vector<16x96xf32>
    %34 = arith.addf %30, %33 : vector<16x96xf32>
    %35 = vector.shape_cast %34 : vector<16x96xf32> to vector<2x8x96xf32>
    %36 = vector.extract_strided_slice %35 {offsets = [0, 0, 0], sizes = [2, 8, 16], strides = [1, 1, 1]} : vector<2x8x96xf32> to vector<2x8x16xf32>
    %37 = vector.extract_strided_slice %35 {offsets = [0, 0, 16], sizes = [2, 8, 16], strides = [1, 1, 1]} : vector<2x8x96xf32> to vector<2x8x16xf32>
    %38 = tpu.concatenate %36, %37 in 0 : vector<2x8x16xf32>, vector<2x8x16xf32> -> vector<4x8x16xf32>
    %39 = vector.extract_strided_slice %35 {offsets = [0, 0, 32], sizes = [2, 8, 16], strides = [1, 1, 1]} : vector<2x8x96xf32> to vector<2x8x16xf32>
    %40 = vector.extract_strided_slice %35 {offsets = [0, 0, 48], sizes = [2, 8, 16], strides = [1, 1, 1]} : vector<2x8x96xf32> to vector<2x8x16xf32>
    %41 = tpu.concatenate %39, %40 in 0 : vector<2x8x16xf32>, vector<2x8x16xf32> -> vector<4x8x16xf32>
    %42 = vector.extract_strided_slice %35 {offsets = [0, 0, 64], sizes = [2, 8, 16], strides = [1, 1, 1]} : vector<2x8x96xf32> to vector<2x8x16xf32>
    %43 = vector.extract_strided_slice %35 {offsets = [0, 0, 80], sizes = [2, 8, 16], strides = [1, 1, 1]} : vector<2x8x96xf32> to vector<2x8x16xf32>
    %44 = tpu.concatenate %42, %43 in 0 : vector<2x8x16xf32>, vector<2x8x16xf32> -> vector<4x8x16xf32>
    %45 = arith.truncf %38 : vector<4x8x16xf32> to vector<4x8x16xbf16>
    %46 = arith.truncf %41 : vector<4x8x16xf32> to vector<4x8x16xbf16>
    "tpu.trace_start"() <{level = 10 : i32, message = "bqd,bkd->bqk"}> : () -> ()
    %cst_19 = arith.constant dense<0.000000e+00> : vector<4x8x8xf32>
    %47 = tpu.matmul %45, %46, %cst_19 {dimension_numbers = #tpu.dot_dimension_numbers<[2], [2], [1], [1], [0, 0, 0, 1, 1, 1], [0], [0]>} : vector<4x8x16xbf16>, vector<4x8x16xbf16>, vector<4x8x8xf32> -> vector<4x8x8xf32>
    "tpu.trace_stop"() : () -> ()
    %cst_20 = arith.constant 2.500000e-01 : f32
    %48 = vector.broadcast %cst_20 : f32 to vector<4x8x8xf32>
    %49 = arith.mulf %47, %48 : vector<4x8x8xf32>
    %50 = vector.broadcast %26 : vector<4x1x8xf32> to vector<4x8x8xf32>
    %51 = arith.addf %49, %50 : vector<4x8x8xf32>
    %cst_21 = arith.constant dense<0xFF800000> : vector<4x8xf32>
    %52 = vector.multi_reduction <maximumf>, %51, %cst_21 [2] : vector<4x8x8xf32> to vector<4x8xf32>
    %53 = vector.shape_cast %52 : vector<4x8xf32> to vector<4x8x1xf32>
    %54 = vector.broadcast %53 : vector<4x8x1xf32> to vector<4x8x8xf32>
    %55 = arith.subf %51, %54 : vector<4x8x8xf32>
    %56 = math.exp %55 : vector<4x8x8xf32>
    %cst_22 = arith.constant dense<0.000000e+00> : vector<4x8xf32>
    %57 = vector.multi_reduction <add>, %56, %cst_22 [2] : vector<4x8x8xf32> to vector<4x8xf32>
    %58 = vector.shape_cast %57 : vector<4x8xf32> to vector<4x8x1xf32>
    %59 = tpu.reciprocal %58 {approx = true} : vector<4x8x1xf32> -> vector<4x8x1xf32>
    %60 = vector.broadcast %59 : vector<4x8x1xf32> to vector<4x8x8xf32>
    %61 = arith.mulf %56, %60 : vector<4x8x8xf32>
    %62 = arith.truncf %61 : vector<4x8x8xf32> to vector<4x8x8xbf16>
    %63 = arith.truncf %44 : vector<4x8x16xf32> to vector<4x8x16xbf16>
    "tpu.trace_start"() <{level = 10 : i32, message = "bqk,bkd->bqd"}> : () -> ()
    %cst_23 = arith.constant dense<0.000000e+00> : vector<4x8x16xf32>
    %64 = tpu.matmul %62, %63, %cst_23 {dimension_numbers = #tpu.dot_dimension_numbers<[2], [1], [1], [2], [0, 0, 0, 1, 1, 2], [0], [0]>} : vector<4x8x8xbf16>, vector<4x8x16xbf16>, vector<4x8x16xf32> -> vector<4x8x16xf32>
    "tpu.trace_stop"() : () -> ()
    %65 = vector.extract_strided_slice %64 {offsets = [0, 0, 0], sizes = [2, 8, 16], strides = [1, 1, 1]} : vector<4x8x16xf32> to vector<2x8x16xf32>
    %66 = vector.extract_strided_slice %64 {offsets = [2, 0, 0], sizes = [2, 8, 16], strides = [1, 1, 1]} : vector<4x8x16xf32> to vector<2x8x16xf32>
    %67 = tpu.concatenate %65, %66 in 2 : vector<2x8x16xf32>, vector<2x8x16xf32> -> vector<2x8x32xf32>
    %68 = vector.shape_cast %67 : vector<2x8x32xf32> to vector<16x32xf32>
    %69 = arith.truncf %68 : vector<16x32xf32> to vector<16x32xbf16>
    %c0_24 = arith.constant 0 : index
    %c0_25 = arith.constant 0 : index
    %c0_26 = arith.constant 0 : index
    %70 = vector.load %arg6[%c0_24, %c0_25, %c0_26] : memref<2x32x32xbf16, #tpu.memory_space<vmem>>, vector<1x32x32xbf16>
    %71 = vector.shape_cast %70 : vector<1x32x32xbf16> to vector<32x32xbf16>
    %cst_27 = arith.constant dense<0.000000e+00> : vector<16x32xf32>
    %72 = tpu.matmul %69, %71, %cst_27 {dimension_numbers = #tpu.dot_dimension_numbers<[1], [0], [0], [1], [0, 0, 1, 1], [], []>} : vector<16x32xbf16>, vector<32x32xbf16>, vector<16x32xf32> -> vector<16x32xf32>
    %c0_28 = arith.constant 0 : index
    %c0_29 = arith.constant 0 : index
    %c0_30 = arith.constant 0 : index
    %73 = vector.load %arg7[%c0_28, %c0_29, %c0_30] : memref<2x1x32xf32, #tpu.memory_space<vmem>>, vector<1x1x32xf32>
    %74 = vector.shape_cast %73 : vector<1x1x32xf32> to vector<1x32xf32>
    %75 = vector.broadcast %74 : vector<1x32xf32> to vector<16x32xf32>
    %76 = arith.addf %72, %75 : vector<16x32xf32>
    %77 = arith.addf %24, %76 : vector<16x32xf32>
    %c0_31 = arith.constant 0 : index
    %c0_32 = arith.constant 0 : index
    %c0_33 = arith.constant 0 : index
    %78 = vector.load %arg8[%c0_31, %c0_32, %c0_33] : memref<2x1x32xf32, #tpu.memory_space<vmem>>, vector<1x1x32xf32>
    %79 = vector.shape_cast %78 : vector<1x1x32xf32> to vector<1x32xf32>
    %c0_34 = arith.constant 0 : index
    %c0_35 = arith.constant 0 : index
    %c0_36 = arith.constant 0 : index
    %80 = vector.load %arg9[%c0_34, %c0_35, %c0_36] : memref<2x1x32xf32, #tpu.memory_space<vmem>>, vector<1x1x32xf32>
    %81 = vector.shape_cast %80 : vector<1x1x32xf32> to vector<1x32xf32>
    %cst_37 = arith.constant dense<0.000000e+00> : vector<16xf32>
    %82 = vector.multi_reduction <add>, %77, %cst_37 [1] : vector<16x32xf32> to vector<16xf32>
    %83 = vector.shape_cast %82 : vector<16xf32> to vector<16x1xf32>
    %cst_38 = arith.constant 3.200000e+01 : f32
    %84 = vector.broadcast %cst_38 : f32 to vector<16x1xf32>
    %85 = arith.divf %83, %84 : vector<16x1xf32>
    %86 = vector.broadcast %85 : vector<16x1xf32> to vector<16x32xf32>
    %87 = arith.subf %77, %86 : vector<16x32xf32>
    %88 = arith.mulf %87, %87 : vector<16x32xf32>
    %cst_39 = arith.constant dense<0.000000e+00> : vector<16xf32>
    %89 = vector.multi_reduction <add>, %88, %cst_39 [1] : vector<16x32xf32> to vector<16xf32>
    %90 = vector.shape_cast %89 : vector<16xf32> to vector<16x1xf32>
    %cst_40 = arith.constant 3.200000e+01 : f32
    %91 = vector.broadcast %cst_40 : f32 to vector<16x1xf32>
    %92 = arith.divf %90, %91 : vector<16x1xf32>
    %93 = vector.broadcast %85 : vector<16x1xf32> to vector<16x32xf32>
    %94 = arith.subf %77, %93 : vector<16x32xf32>
    %cst_41 = arith.constant 9.99999996E-13 : f32
    %95 = vector.broadcast %cst_41 : f32 to vector<16x1xf32>
    %96 = arith.addf %92, %95 : vector<16x1xf32>
    %97 = math.rsqrt %96 : vector<16x1xf32>
    %98 = vector.broadcast %97 : vector<16x1xf32> to vector<16x32xf32>
    %99 = arith.mulf %94, %98 : vector<16x32xf32>
    %100 = vector.broadcast %79 : vector<1x32xf32> to vector<16x32xf32>
    %101 = arith.mulf %99, %100 : vector<16x32xf32>
    %102 = vector.broadcast %81 : vector<1x32xf32> to vector<16x32xf32>
    %103 = arith.addf %101, %102 : vector<16x32xf32>
    %104 = arith.truncf %103 : vector<16x32xf32> to vector<16x32xbf16>
    %c0_42 = arith.constant 0 : index
    %c0_43 = arith.constant 0 : index
    %c0_44 = arith.constant 0 : index
    %105 = vector.load %arg10[%c0_42, %c0_43, %c0_44] : memref<2x32x64xbf16, #tpu.memory_space<vmem>>, vector<1x32x64xbf16>
    %106 = vector.shape_cast %105 : vector<1x32x64xbf16> to vector<32x64xbf16>
    %cst_45 = arith.constant dense<0.000000e+00> : vector<16x64xf32>
    %107 = tpu.matmul %104, %106, %cst_45 {dimension_numbers = #tpu.dot_dimension_numbers<[1], [0], [0], [1], [0, 0, 1, 1], [], []>} : vector<16x32xbf16>, vector<32x64xbf16>, vector<16x64xf32> -> vector<16x64xf32>
    %c0_46 = arith.constant 0 : index
    %c0_47 = arith.constant 0 : index
    %c0_48 = arith.constant 0 : index
    %108 = vector.load %arg11[%c0_46, %c0_47, %c0_48] : memref<2x1x64xf32, #tpu.memory_space<vmem>>, vector<1x1x64xf32>
    %109 = vector.shape_cast %108 : vector<1x1x64xf32> to vector<1x64xf32>
    %110 = vector.broadcast %109 : vector<1x64xf32> to vector<16x64xf32>
    %111 = arith.addf %107, %110 : vector<16x64xf32>
    %cst_49 = arith.constant 5.000000e-01 : f32
    %112 = vector.broadcast %cst_49 : f32 to vector<16x64xf32>
    %113 = arith.mulf %112, %111 : vector<16x64xf32>
    %cst_50 = arith.constant 4.471500e-02 : f32
    %114 = vector.broadcast %cst_50 : f32 to vector<16x64xf32>
    %115 = arith.mulf %114, %111 : vector<16x64xf32>
    %116 = arith.mulf %115, %111 : vector<16x64xf32>
    %117 = arith.mulf %116, %111 : vector<16x64xf32>
    %118 = arith.addf %111, %117 : vector<16x64xf32>
    %cst_51 = arith.constant 0.797884583 : f32
    %119 = vector.broadcast %cst_51 : f32 to vector<16x64xf32>
    %120 = arith.mulf %119, %118 : vector<16x64xf32>
    %121 = math.tanh %120 : vector<16x64xf32>
    %cst_52 = arith.constant 1.000000e+00 : f32
    %122 = vector.broadcast %cst_52 : f32 to vector<16x64xf32>
    %123 = arith.addf %122, %121 : vector<16x64xf32>
    %124 = arith.mulf %113, %123 : vector<16x64xf32>
    %125 = arith.truncf %124 : vector<16x64xf32> to vector<16x64xbf16>
    %c0_53 = arith.constant 0 : index
    %c0_54 = arith.constant 0 : index
    %c0_55 = arith.constant 0 : index
    %126 = vector.load %arg12[%c0_53, %c0_54, %c0_55] : memref<2x64x32xbf16, #tpu.memory_space<vmem>>, vector<1x64x32xbf16>
    %127 = vector.shape_cast %126 : vector<1x64x32xbf16> to vector<64x32xbf16>
    %cst_56 = arith.constant dense<0.000000e+00> : vector<16x32xf32>
    %128 = tpu.matmul %125, %127, %cst_56 {dimension_numbers = #tpu.dot_dimension_numbers<[1], [0], [0], [1], [0, 0, 1, 1], [], []>} : vector<16x64xbf16>, vector<64x32xbf16>, vector<16x32xf32> -> vector<16x32xf32>
    %c0_57 = arith.constant 0 : index
    %c0_58 = arith.constant 0 : index
    %c0_59 = arith.constant 0 : index
    %129 = vector.load %arg13[%c0_57, %c0_58, %c0_59] : memref<2x1x32xf32, #tpu.memory_space<vmem>>, vector<1x1x32xf32>
    %130 = vector.shape_cast %129 : vector<1x1x32xf32> to vector<1x32xf32>
    %131 = vector.broadcast %130 : vector<1x32xf32> to vector<16x32xf32>
    %132 = arith.addf %128, %131 : vector<16x32xf32>
    %133 = arith.addf %103, %132 : vector<16x32xf32>
    %c0_60 = arith.constant 0 : index
    %c0_61 = arith.constant 0 : index
    %c0_62 = arith.constant 0 : index
    %134 = vector.load %arg14[%c0_60, %c0_61, %c0_62] : memref<2x1x32xf32, #tpu.memory_space<vmem>>, vector<1x1x32xf32>
    %135 = vector.shape_cast %134 : vector<1x1x32xf32> to vector<1x32xf32>
    %c0_63 = arith.constant 0 : index
    %c0_64 = arith.constant 0 : index
    %c0_65 = arith.constant 0 : index
    %136 = vector.load %arg15[%c0_63, %c0_64, %c0_65] : memref<2x1x32xf32, #tpu.memory_space<vmem>>, vector<1x1x32xf32>
    %137 = vector.shape_cast %136 : vector<1x1x32xf32> to vector<1x32xf32>
    %cst_66 = arith.constant dense<0.000000e+00> : vector<16xf32>
    %138 = vector.multi_reduction <add>, %133, %cst_66 [1] : vector<16x32xf32> to vector<16xf32>
    %139 = vector.shape_cast %138 : vector<16xf32> to vector<16x1xf32>
    %cst_67 = arith.constant 3.200000e+01 : f32
    %140 = vector.broadcast %cst_67 : f32 to vector<16x1xf32>
    %141 = arith.divf %139, %140 : vector<16x1xf32>
    %142 = vector.broadcast %141 : vector<16x1xf32> to vector<16x32xf32>
    %143 = arith.subf %133, %142 : vector<16x32xf32>
    %144 = arith.mulf %143, %143 : vector<16x32xf32>
    %cst_68 = arith.constant dense<0.000000e+00> : vector<16xf32>
    %145 = vector.multi_reduction <add>, %144, %cst_68 [1] : vector<16x32xf32> to vector<16xf32>
    %146 = vector.shape_cast %145 : vector<16xf32> to vector<16x1xf32>
    %cst_69 = arith.constant 3.200000e+01 : f32
    %147 = vector.broadcast %cst_69 : f32 to vector<16x1xf32>
    %148 = arith.divf %146, %147 : vector<16x1xf32>
    %149 = vector.broadcast %141 : vector<16x1xf32> to vector<16x32xf32>
    %150 = arith.subf %133, %149 : vector<16x32xf32>
    %cst_70 = arith.constant 9.99999996E-13 : f32
    %151 = vector.broadcast %cst_70 : f32 to vector<16x1xf32>
    %152 = arith.addf %148, %151 : vector<16x1xf32>
    %153 = math.rsqrt %152 : vector<16x1xf32>
    %154 = vector.broadcast %153 : vector<16x1xf32> to vector<16x32xf32>
    %155 = arith.mulf %150, %154 : vector<16x32xf32>
    %156 = vector.broadcast %135 : vector<1x32xf32> to vector<16x32xf32>
    %157 = arith.mulf %155, %156 : vector<16x32xf32>
    %158 = vector.broadcast %137 : vector<1x32xf32> to vector<16x32xf32>
    %159 = arith.addf %157, %158 : vector<16x32xf32>
    %160 = arith.truncf %159 : vector<16x32xf32> to vector<16x32xbf16>
    %c1 = arith.constant 1 : index
    %c0_71 = arith.constant 0 : index
    %c0_72 = arith.constant 0 : index
    %161 = vector.load %arg4[%c1, %c0_71, %c0_72] : memref<2x32x96xbf16, #tpu.memory_space<vmem>>, vector<1x32x96xbf16>
    %162 = vector.shape_cast %161 : vector<1x32x96xbf16> to vector<32x96xbf16>
    %cst_73 = arith.constant dense<0.000000e+00> : vector<16x96xf32>
    %163 = tpu.matmul %160, %162, %cst_73 {dimension_numbers = #tpu.dot_dimension_numbers<[1], [0], [0], [1], [0, 0, 1, 1], [], []>} : vector<16x32xbf16>, vector<32x96xbf16>, vector<16x96xf32> -> vector<16x96xf32>
    %c1_74 = arith.constant 1 : index
    %c0_75 = arith.constant 0 : index
    %c0_76 = arith.constant 0 : index
    %164 = vector.load %arg5[%c1_74, %c0_75, %c0_76] : memref<2x1x96xf32, #tpu.memory_space<vmem>>, vector<1x1x96xf32>
    %165 = vector.shape_cast %164 : vector<1x1x96xf32> to vector<1x96xf32>
    %166 = vector.broadcast %165 : vector<1x96xf32> to vector<16x96xf32>
    %167 = arith.addf %163, %166 : vector<16x96xf32>
    %168 = vector.shape_cast %167 : vector<16x96xf32> to vector<2x8x96xf32>
    %169 = vector.extract_strided_slice %168 {offsets = [0, 0, 0], sizes = [2, 8, 16], strides = [1, 1, 1]} : vector<2x8x96xf32> to vector<2x8x16xf32>
    %170 = vector.extract_strided_slice %168 {offsets = [0, 0, 16], sizes = [2, 8, 16], strides = [1, 1, 1]} : vector<2x8x96xf32> to vector<2x8x16xf32>
    %171 = tpu.concatenate %169, %170 in 0 : vector<2x8x16xf32>, vector<2x8x16xf32> -> vector<4x8x16xf32>
    %172 = vector.extract_strided_slice %168 {offsets = [0, 0, 32], sizes = [2, 8, 16], strides = [1, 1, 1]} : vector<2x8x96xf32> to vector<2x8x16xf32>
    %173 = vector.extract_strided_slice %168 {offsets = [0, 0, 48], sizes = [2, 8, 16], strides = [1, 1, 1]} : vector<2x8x96xf32> to vector<2x8x16xf32>
    %174 = tpu.concatenate %172, %173 in 0 : vector<2x8x16xf32>, vector<2x8x16xf32> -> vector<4x8x16xf32>
    %175 = vector.extract_strided_slice %168 {offsets = [0, 0, 64], sizes = [2, 8, 16], strides = [1, 1, 1]} : vector<2x8x96xf32> to vector<2x8x16xf32>
    %176 = vector.extract_strided_slice %168 {offsets = [0, 0, 80], sizes = [2, 8, 16], strides = [1, 1, 1]} : vector<2x8x96xf32> to vector<2x8x16xf32>
    %177 = tpu.concatenate %175, %176 in 0 : vector<2x8x16xf32>, vector<2x8x16xf32> -> vector<4x8x16xf32>
    %178 = arith.truncf %171 : vector<4x8x16xf32> to vector<4x8x16xbf16>
    %179 = arith.truncf %174 : vector<4x8x16xf32> to vector<4x8x16xbf16>
    "tpu.trace_start"() <{level = 10 : i32, message = "bqd,bkd->bqk"}> : () -> ()
    %cst_77 = arith.constant dense<0.000000e+00> : vector<4x8x8xf32>
    %180 = tpu.matmul %178, %179, %cst_77 {dimension_numbers = #tpu.dot_dimension_numbers<[2], [2], [1], [1], [0, 0, 0, 1, 1, 1], [0], [0]>} : vector<4x8x16xbf16>, vector<4x8x16xbf16>, vector<4x8x8xf32> -> vector<4x8x8xf32>
    "tpu.trace_stop"() : () -> ()
    %cst_78 = arith.constant 2.500000e-01 : f32
    %181 = vector.broadcast %cst_78 : f32 to vector<4x8x8xf32>
    %182 = arith.mulf %180, %181 : vector<4x8x8xf32>
    %183 = vector.broadcast %26 : vector<4x1x8xf32> to vector<4x8x8xf32>
    %184 = arith.addf %182, %183 : vector<4x8x8xf32>
    %cst_79 = arith.constant dense<0xFF800000> : vector<4x8xf32>
    %185 = vector.multi_reduction <maximumf>, %184, %cst_79 [2] : vector<4x8x8xf32> to vector<4x8xf32>
    %186 = vector.shape_cast %185 : vector<4x8xf32> to vector<4x8x1xf32>
    %187 = vector.broadcast %186 : vector<4x8x1xf32> to vector<4x8x8xf32>
    %188 = arith.subf %184, %187 : vector<4x8x8xf32>
    %189 = math.exp %188 : vector<4x8x8xf32>
    %cst_80 = arith.constant dense<0.000000e+00> : vector<4x8xf32>
    %190 = vector.multi_reduction <add>, %189, %cst_80 [2] : vector<4x8x8xf32> to vector<4x8xf32>
    %191 = vector.shape_cast %190 : vector<4x8xf32> to vector<4x8x1xf32>
    %192 = tpu.reciprocal %191 {approx = true} : vector<4x8x1xf32> -> vector<4x8x1xf32>
    %193 = vector.broadcast %192 : vector<4x8x1xf32> to vector<4x8x8xf32>
    %194 = arith.mulf %189, %193 : vector<4x8x8xf32>
    %195 = arith.truncf %194 : vector<4x8x8xf32> to vector<4x8x8xbf16>
    %196 = arith.truncf %177 : vector<4x8x16xf32> to vector<4x8x16xbf16>
    "tpu.trace_start"() <{level = 10 : i32, message = "bqk,bkd->bqd"}> : () -> ()
    %cst_81 = arith.constant dense<0.000000e+00> : vector<4x8x16xf32>
    %197 = tpu.matmul %195, %196, %cst_81 {dimension_numbers = #tpu.dot_dimension_numbers<[2], [1], [1], [2], [0, 0, 0, 1, 1, 2], [0], [0]>} : vector<4x8x8xbf16>, vector<4x8x16xbf16>, vector<4x8x16xf32> -> vector<4x8x16xf32>
    "tpu.trace_stop"() : () -> ()
    %198 = vector.extract_strided_slice %197 {offsets = [0, 0, 0], sizes = [2, 8, 16], strides = [1, 1, 1]} : vector<4x8x16xf32> to vector<2x8x16xf32>
    %199 = vector.extract_strided_slice %197 {offsets = [2, 0, 0], sizes = [2, 8, 16], strides = [1, 1, 1]} : vector<4x8x16xf32> to vector<2x8x16xf32>
    %200 = tpu.concatenate %198, %199 in 2 : vector<2x8x16xf32>, vector<2x8x16xf32> -> vector<2x8x32xf32>
    %201 = vector.shape_cast %200 : vector<2x8x32xf32> to vector<16x32xf32>
    %202 = arith.truncf %201 : vector<16x32xf32> to vector<16x32xbf16>
    %c1_82 = arith.constant 1 : index
    %c0_83 = arith.constant 0 : index
    %c0_84 = arith.constant 0 : index
    %203 = vector.load %arg6[%c1_82, %c0_83, %c0_84] : memref<2x32x32xbf16, #tpu.memory_space<vmem>>, vector<1x32x32xbf16>
    %204 = vector.shape_cast %203 : vector<1x32x32xbf16> to vector<32x32xbf16>
    %cst_85 = arith.constant dense<0.000000e+00> : vector<16x32xf32>
    %205 = tpu.matmul %202, %204, %cst_85 {dimension_numbers = #tpu.dot_dimension_numbers<[1], [0], [0], [1], [0, 0, 1, 1], [], []>} : vector<16x32xbf16>, vector<32x32xbf16>, vector<16x32xf32> -> vector<16x32xf32>
    %c1_86 = arith.constant 1 : index
    %c0_87 = arith.constant 0 : index
    %c0_88 = arith.constant 0 : index
    %206 = vector.load %arg7[%c1_86, %c0_87, %c0_88] : memref<2x1x32xf32, #tpu.memory_space<vmem>>, vector<1x1x32xf32>
    %207 = vector.shape_cast %206 : vector<1x1x32xf32> to vector<1x32xf32>
    %208 = vector.broadcast %207 : vector<1x32xf32> to vector<16x32xf32>
    %209 = arith.addf %205, %208 : vector<16x32xf32>
    %210 = arith.addf %159, %209 : vector<16x32xf32>
    %c1_89 = arith.constant 1 : index
    %c0_90 = arith.constant 0 : index
    %c0_91 = arith.constant 0 : index
    %211 = vector.load %arg8[%c1_89, %c0_90, %c0_91] : memref<2x1x32xf32, #tpu.memory_space<vmem>>, vector<1x1x32xf32>
    %212 = vector.shape_cast %211 : vector<1x1x32xf32> to vector<1x32xf32>
    %c1_92 = arith.constant 1 : index
    %c0_93 = arith.constant 0 : index
    %c0_94 = arith.constant 0 : index
    %213 = vector.load %arg9[%c1_92, %c0_93, %c0_94] : memref<2x1x32xf32, #tpu.memory_space<vmem>>, vector<1x1x32xf32>
    %214 = vector.shape_cast %213 : vector<1x1x32xf32> to vector<1x32xf32>
    %cst_95 = arith.constant dense<0.000000e+00> : vector<16xf32>
    %215 = vector.multi_reduction <add>, %210, %cst_95 [1] : vector<16x32xf32> to vector<16xf32>
    %216 = vector.shape_cast %215 : vector<16xf32> to vector<16x1xf32>
    %cst_96 = arith.constant 3.200000e+01 : f32
    %217 = vector.broadcast %cst_96 : f32 to vector<16x1xf32>
    %218 = arith.divf %216, %217 : vector<16x1xf32>
    %219 = vector.broadcast %218 : vector<16x1xf32> to vector<16x32xf32>
    %220 = arith.subf %210, %219 : vector<16x32xf32>
    %221 = arith.mulf %220, %220 : vector<16x32xf32>
    %cst_97 = arith.constant dense<0.000000e+00> : vector<16xf32>
    %222 = vector.multi_reduction <add>, %221, %cst_97 [1] : vector<16x32xf32> to vector<16xf32>
    %223 = vector.shape_cast %222 : vector<16xf32> to vector<16x1xf32>
    %cst_98 = arith.constant 3.200000e+01 : f32
    %224 = vector.broadcast %cst_98 : f32 to vector<16x1xf32>
    %225 = arith.divf %223, %224 : vector<16x1xf32>
    %226 = vector.broadcast %218 : vector<16x1xf32> to vector<16x32xf32>
    %227 = arith.subf %210, %226 : vector<16x32xf32>
    %cst_99 = arith.constant 9.99999996E-13 : f32
    %228 = vector.broadcast %cst_99 : f32 to vector<16x1xf32>
    %229 = arith.addf %225, %228 : vector<16x1xf32>
    %230 = math.rsqrt %229 : vector<16x1xf32>
    %231 = vector.broadcast %230 : vector<16x1xf32> to vector<16x32xf32>
    %232 = arith.mulf %227, %231 : vector<16x32xf32>
    %233 = vector.broadcast %212 : vector<1x32xf32> to vector<16x32xf32>
    %234 = arith.mulf %232, %233 : vector<16x32xf32>
    %235 = vector.broadcast %214 : vector<1x32xf32> to vector<16x32xf32>
    %236 = arith.addf %234, %235 : vector<16x32xf32>
    %237 = arith.truncf %236 : vector<16x32xf32> to vector<16x32xbf16>
    %c1_100 = arith.constant 1 : index
    %c0_101 = arith.constant 0 : index
    %c0_102 = arith.constant 0 : index
    %238 = vector.load %arg10[%c1_100, %c0_101, %c0_102] : memref<2x32x64xbf16, #tpu.memory_space<vmem>>, vector<1x32x64xbf16>
    %239 = vector.shape_cast %238 : vector<1x32x64xbf16> to vector<32x64xbf16>
    %cst_103 = arith.constant dense<0.000000e+00> : vector<16x64xf32>
    %240 = tpu.matmul %237, %239, %cst_103 {dimension_numbers = #tpu.dot_dimension_numbers<[1], [0], [0], [1], [0, 0, 1, 1], [], []>} : vector<16x32xbf16>, vector<32x64xbf16>, vector<16x64xf32> -> vector<16x64xf32>
    %c1_104 = arith.constant 1 : index
    %c0_105 = arith.constant 0 : index
    %c0_106 = arith.constant 0 : index
    %241 = vector.load %arg11[%c1_104, %c0_105, %c0_106] : memref<2x1x64xf32, #tpu.memory_space<vmem>>, vector<1x1x64xf32>
    %242 = vector.shape_cast %241 : vector<1x1x64xf32> to vector<1x64xf32>
    %243 = vector.broadcast %242 : vector<1x64xf32> to vector<16x64xf32>
    %244 = arith.addf %240, %243 : vector<16x64xf32>
    %cst_107 = arith.constant 5.000000e-01 : f32
    %245 = vector.broadcast %cst_107 : f32 to vector<16x64xf32>
    %246 = arith.mulf %245, %244 : vector<16x64xf32>
    %cst_108 = arith.constant 4.471500e-02 : f32
    %247 = vector.broadcast %cst_108 : f32 to vector<16x64xf32>
    %248 = arith.mulf %247, %244 : vector<16x64xf32>
    %249 = arith.mulf %248, %244 : vector<16x64xf32>
    %250 = arith.mulf %249, %244 : vector<16x64xf32>
    %251 = arith.addf %244, %250 : vector<16x64xf32>
    %cst_109 = arith.constant 0.797884583 : f32
    %252 = vector.broadcast %cst_109 : f32 to vector<16x64xf32>
    %253 = arith.mulf %252, %251 : vector<16x64xf32>
    %254 = math.tanh %253 : vector<16x64xf32>
    %cst_110 = arith.constant 1.000000e+00 : f32
    %255 = vector.broadcast %cst_110 : f32 to vector<16x64xf32>
    %256 = arith.addf %255, %254 : vector<16x64xf32>
    %257 = arith.mulf %246, %256 : vector<16x64xf32>
    %258 = arith.truncf %257 : vector<16x64xf32> to vector<16x64xbf16>
    %c1_111 = arith.constant 1 : index
    %c0_112 = arith.constant 0 : index
    %c0_113 = arith.constant 0 : index
    %259 = vector.load %arg12[%c1_111, %c0_112, %c0_113] : memref<2x64x32xbf16, #tpu.memory_space<vmem>>, vector<1x64x32xbf16>
    %260 = vector.shape_cast %259 : vector<1x64x32xbf16> to vector<64x32xbf16>
    %cst_114 = arith.constant dense<0.000000e+00> : vector<16x32xf32>
    %261 = tpu.matmul %258, %260, %cst_114 {dimension_numbers = #tpu.dot_dimension_numbers<[1], [0], [0], [1], [0, 0, 1, 1], [], []>} : vector<16x64xbf16>, vector<64x32xbf16>, vector<16x32xf32> -> vector<16x32xf32>
    %c1_115 = arith.constant 1 : index
    %c0_116 = arith.constant 0 : index
    %c0_117 = arith.constant 0 : index
    %262 = vector.load %arg13[%c1_115, %c0_116, %c0_117] : memref<2x1x32xf32, #tpu.memory_space<vmem>>, vector<1x1x32xf32>
    %263 = vector.shape_cast %262 : vector<1x1x32xf32> to vector<1x32xf32>
    %264 = vector.broadcast %263 : vector<1x32xf32> to vector<16x32xf32>
    %265 = arith.addf %261, %264 : vector<16x32xf32>
    %266 = arith.addf %236, %265 : vector<16x32xf32>
    %c1_118 = arith.constant 1 : index
    %c0_119 = arith.constant 0 : index
    %c0_120 = arith.constant 0 : index
    %267 = vector.load %arg14[%c1_118, %c0_119, %c0_120] : memref<2x1x32xf32, #tpu.memory_space<vmem>>, vector<1x1x32xf32>
    %268 = vector.shape_cast %267 : vector<1x1x32xf32> to vector<1x32xf32>
    %c1_121 = arith.constant 1 : index
    %c0_122 = arith.constant 0 : index
    %c0_123 = arith.constant 0 : index
    %269 = vector.load %arg15[%c1_121, %c0_122, %c0_123] : memref<2x1x32xf32, #tpu.memory_space<vmem>>, vector<1x1x32xf32>
    %270 = vector.shape_cast %269 : vector<1x1x32xf32> to vector<1x32xf32>
    %cst_124 = arith.constant dense<0.000000e+00> : vector<16xf32>
    %271 = vector.multi_reduction <add>, %266, %cst_124 [1] : vector<16x32xf32> to vector<16xf32>
    %272 = vector.shape_cast %271 : vector<16xf32> to vector<16x1xf32>
    %cst_125 = arith.constant 3.200000e+01 : f32
    %273 = vector.broadcast %cst_125 : f32 to vector<16x1xf32>
    %274 = arith.divf %272, %273 : vector<16x1xf32>
    %275 = vector.broadcast %274 : vector<16x1xf32> to vector<16x32xf32>
    %276 = arith.subf %266, %275 : vector<16x32xf32>
    %277 = arith.mulf %276, %276 : vector<16x32xf32>
    %cst_126 = arith.constant dense<0.000000e+00> : vector<16xf32>
    %278 = vector.multi_reduction <add>, %277, %cst_126 [1] : vector<16x32xf32> to vector<16xf32>
    %279 = vector.shape_cast %278 : vector<16xf32> to vector<16x1xf32>
    %cst_127 = arith.constant 3.200000e+01 : f32
    %280 = vector.broadcast %cst_127 : f32 to vector<16x1xf32>
    %281 = arith.divf %279, %280 : vector<16x1xf32>
    %282 = vector.broadcast %274 : vector<16x1xf32> to vector<16x32xf32>
    %283 = arith.subf %266, %282 : vector<16x32xf32>
    %cst_128 = arith.constant 9.99999996E-13 : f32
    %284 = vector.broadcast %cst_128 : f32 to vector<16x1xf32>
    %285 = arith.addf %281, %284 : vector<16x1xf32>
    %286 = math.rsqrt %285 : vector<16x1xf32>
    %287 = vector.broadcast %286 : vector<16x1xf32> to vector<16x32xf32>
    %288 = arith.mulf %283, %287 : vector<16x32xf32>
    %289 = vector.broadcast %268 : vector<1x32xf32> to vector<16x32xf32>
    %290 = arith.mulf %288, %289 : vector<16x32xf32>
    %291 = vector.broadcast %270 : vector<1x32xf32> to vector<16x32xf32>
    %292 = arith.addf %290, %291 : vector<16x32xf32>
    %293 = vector.extract_strided_slice %292 {offsets = [0, 0], sizes = [1, 32], strides = [1, 1]} : vector<16x32xf32> to vector<1x32xf32>
    %294 = vector.extract_strided_slice %292 {offsets = [8, 0], sizes = [1, 32], strides = [1, 1]} : vector<16x32xf32> to vector<1x32xf32>
    %295 = tpu.concatenate %293, %294 in 0 : vector<1x32xf32>, vector<1x32xf32> -> vector<2x32xf32>
    %296 = arith.truncf %295 : vector<2x32xf32> to vector<2x32xbf16>
    %c0_129 = arith.constant 0 : index
    %c0_130 = arith.constant 0 : index
    %297 = vector.load %arg16[%c0_129, %c0_130] : memref<32x32xbf16, #tpu.memory_space<vmem>>, vector<32x32xbf16>
    %cst_131 = arith.constant dense<0.000000e+00> : vector<2x32xf32>
    %298 = tpu.matmul %296, %297, %cst_131 {dimension_numbers = #tpu.dot_dimension_numbers<[1], [0], [0], [1], [0, 0, 1, 1], [], []>} : vector<2x32xbf16>, vector<32x32xbf16>, vector<2x32xf32> -> vector<2x32xf32>
    %c0_132 = arith.constant 0 : index
    %c0_133 = arith.constant 0 : index
    %299 = vector.load %arg17[%c0_132, %c0_133] : memref<1x32xf32, #tpu.memory_space<vmem>>, vector<1x32xf32>
    %300 = vector.broadcast %299 : vector<1x32xf32> to vector<2x32xf32>
    %301 = arith.addf %298, %300 : vector<2x32xf32>
    %302 = math.tanh %301 : vector<2x32xf32>
    %303 = arith.truncf %302 : vector<2x32xf32> to vector<2x32xbf16>
    %c0_134 = arith.constant 0 : index
    %c0_135 = arith.constant 0 : index
    %304 = vector.load %arg18[%c0_134, %c0_135] : memref<32x5xbf16, #tpu.memory_space<vmem>>, vector<32x5xbf16>
    %cst_136 = arith.constant dense<0.000000e+00> : vector<2x5xf32>
    %305 = tpu.matmul %303, %304, %cst_136 {dimension_numbers = #tpu.dot_dimension_numbers<[1], [0], [0], [1], [0, 0, 1, 1], [], []>} : vector<2x32xbf16>, vector<32x5xbf16>, vector<2x5xf32> -> vector<2x5xf32>
    %c0_137 = arith.constant 0 : index
    %c0_138 = arith.constant 0 : index
    %306 = vector.load %arg19[%c0_137, %c0_138] : memref<1x5xf32, #tpu.memory_space<vmem>>, vector<1x5xf32>
    %307 = vector.broadcast %306 : vector<1x5xf32> to vector<2x5xf32>
    %308 = arith.addf %305, %307 : vector<2x5xf32>
    %309 = vector.extract_strided_slice %308 {offsets = [0, 0], sizes = [2, 3], strides = [1, 1]} : vector<2x5xf32> to vector<2x3xf32>
    %cst_139 = arith.constant dense<0xFF800000> : vector<2xf32>
    %310 = vector.multi_reduction <maximumf>, %309, %cst_139 [1] : vector<2x3xf32> to vector<2xf32>
    %311 = vector.shape_cast %310 : vector<2xf32> to vector<2x1xf32>
    %312 = vector.broadcast %311 : vector<2x1xf32> to vector<2x3xf32>
    %313 = arith.subf %309, %312 : vector<2x3xf32>
    %314 = math.exp %313 : vector<2x3xf32>
    %cst_140 = arith.constant dense<0.000000e+00> : vector<2xf32>
    %315 = vector.multi_reduction <add>, %314, %cst_140 [1] : vector<2x3xf32> to vector<2xf32>
    %316 = vector.shape_cast %315 : vector<2xf32> to vector<2x1xf32>
    %317 = math.log %316 : vector<2x1xf32>
    %318 = vector.broadcast %317 : vector<2x1xf32> to vector<2x3xf32>
    %319 = arith.subf %313, %318 : vector<2x3xf32>
    %c0_141 = arith.constant 0 : index
    %c0_142 = arith.constant 0 : index
    %320 = vector.load %arg20[%c0_141, %c0_142] : memref<2x3xf32, #tpu.memory_space<vmem>>, vector<2x3xf32>
    tpu.vector_store %arg20[%c0_141, %c0_142], %319 {strides = array<i32>} : memref<2x3xf32, #tpu.memory_space<vmem>>, vector<2x3xf32>,
    %321 = vector.extract_strided_slice %308 {offsets = [0, 3], sizes = [2, 2], strides = [1, 1]} : vector<2x5xf32> to vector<2x2xf32>
    %cst_143 = arith.constant dense<0xFF800000> : vector<2xf32>
    %322 = vector.multi_reduction <maximumf>, %321, %cst_143 [1] : vector<2x2xf32> to vector<2xf32>
    %323 = vector.shape_cast %322 : vector<2xf32> to vector<2x1xf32>
    %324 = vector.broadcast %323 : vector<2x1xf32> to vector<2x2xf32>
    %325 = arith.subf %321, %324 : vector<2x2xf32>
    %326 = math.exp %325 : vector<2x2xf32>
    %cst_144 = arith.constant dense<0.000000e+00> : vector<2xf32>
    %327 = vector.multi_reduction <add>, %326, %cst_144 [1] : vector<2x2xf32> to vector<2xf32>
    %328 = vector.shape_cast %327 : vector<2xf32> to vector<2x1xf32>
    %329 = math.log %328 : vector<2x1xf32>
    %330 = vector.broadcast %329 : vector<2x1xf32> to vector<2x2xf32>
    %331 = arith.subf %325, %330 : vector<2x2xf32>
    %c0_145 = arith.constant 0 : index
    %c0_146 = arith.constant 0 : index
    %332 = vector.load %arg21[%c0_145, %c0_146] : memref<2x2xf32, #tpu.memory_space<vmem>>, vector<2x2xf32>
    tpu.vector_store %arg21[%c0_145, %c0_146], %331 {strides = array<i32>} : memref<2x2xf32, #tpu.memory_space<vmem>>, vector<2x2xf32>,
    return
  }
}

</mosaic_0001>

<llo_original>
// kernel: forward.1
$region0: #{forward.1}
  #allocation0 [shape = 'u32[]', space=smem, size = 0x4, offset = 0x4, fixed_abs, tag = 'smem constant byte address 0x4 - core index']
  #allocation1 [shape = 'u32[72,128]{1,0:T(1,128)}', space=vmem, size = 0x9000, scoped, tag = 'internal scratch']
  %s0 = inlined_call_operand.vmem [shape: f32[16,32], index: 0, kind: input, shape index: {}]
  %s1 = inlined_call_operand.vmem [shape: f32[2,1,8], index: 1, kind: input, shape index: {}]
  %s2 = inlined_call_operand.vmem [shape: f32[1,32], index: 2, kind: input, shape index: {}]
  %s3 = inlined_call_operand.vmem [shape: f32[1,32], index: 3, kind: input, shape index: {}]
  %s4 = inlined_call_operand.vmem [shape: bf16[2,32,96], index: 4, kind: input, shape index: {}]
  %s5 = inlined_call_operand.vmem [shape: f32[2,1,96], index: 5, kind: input, shape index: {}]
  %s6 = inlined_call_operand.vmem [shape: bf16[2,32,32], index: 6, kind: input, shape index: {}]
  %s7 = inlined_call_operand.vmem [shape: f32[2,1,32], index: 7, kind: input, shape index: {}]
  %s8 = inlined_call_operand.vmem [shape: f32[2,1,32], index: 8, kind: input, shape index: {}]
  %s9 = inlined_call_operand.vmem [shape: f32[2,1,32], index: 9, kind: input, shape index: {}]
  %s10 = inlined_call_operand.vmem [shape: bf16[2,32,64], index: 10, kind: input, shape index: {}]
  %s11 = inlined_call_operand.vmem [shape: f32[2,1,64], index: 11, kind: input, shape index: {}]
  %s12 = inlined_call_operand.vmem [shape: bf16[2,64,32], index: 12, kind: input, shape index: {}]
  %s13 = inlined_call_operand.vmem [shape: f32[2,1,32], index: 13, kind: input, shape index: {}]
  %s14 = inlined_call_operand.vmem [shape: f32[2,1,32], index: 14, kind: input, shape index: {}]
  %s15 = inlined_call_operand.vmem [shape: f32[2,1,32], index: 15, kind: input, shape index: {}]
  %s16 = inlined_call_operand.vmem [shape: bf16[32,32], index: 16, kind: input, shape index: {}]
  %s17 = inlined_call_operand.vmem [shape: f32[1,32], index: 17, kind: input, shape index: {}]
  %s18 = inlined_call_operand.vmem [shape: bf16[32,5], index: 18, kind: input, shape index: {}]
  %s19 = inlined_call_operand.vmem [shape: f32[1,5], index: 19, kind: input, shape index: {}]
  %s20 = inlined_call_operand.hbm [shape: f32[2,3], index: 20, kind: output, shape index: {0}]
  %s21 = inlined_call_operand.hbm [shape: f32[2,2], index: 21, kind: output, shape index: {1}]
  %22 = xla_tuple %s20, %s21
  %s23 = sld [smem:[#allocation0]]
  $region98: #{forward.1} parent=0
    _
  %s25 = ssub.s32 1, %s23
  %s26 = scalar_select 0, %s25, %s23
  $region1: #{forward.1} parent=0
    #allocation2 [shape = 'u8[1024]{0}', space=vmem, size = 0x400, scoped, tag = 'output window, operand 0, single buffered']
    #allocation3 [shape = 's32[1]{0}', space=sflag, size = 0x4, scoped, tag = 'scoped memory for forward.1']
    #allocation4 [shape = 'u8[1024]{0}', space=vmem, size = 0x400, scoped, tag = 'output window, operand 1, single buffered']
    #allocation5 [shape = 's32[1]{0}', space=sflag, size = 0x4, scoped, tag = 'scoped memory for forward.1']
    %27 = vsyncpa [#allocation3], 0
    %28 = vsyncpa [#allocation5], 0
    // Predicated region
    $region2: #{forward.1} parent=1 // pred_check
      _
    $region3: #{forward.1} parent=1 // pred_check_branch
      %30 = sbr.rel (0) target = $region5
    $region4: #{forward.1} parent=1 // pred_region
      _
    $region5: #{forward.1} parent=1 // pred_fallthru
      _
    // Predicated region
    $region6: #{forward.1} parent=1 // pred_check
      _
    $region7: #{forward.1} parent=1 // pred_check_branch
      %32 = sbr.rel (0) target = $region9
    $region8: #{forward.1} parent=1 // pred_region
      _
    $region9: #{forward.1} parent=1 // pred_fallthru
      _
    // Predicated region
    $region10: #{forward.1} parent=1 // pred_check
      _
    $region11: #{forward.1} parent=1 // pred_check_branch
      %34 = sbr.rel (0) target = $region13
    $region12: #{forward.1} parent=1 // pred_region
      _
    $region13: #{forward.1} parent=1 // pred_fallthru
      _
    // Predicated region
    $region14: #{forward.1} parent=1 // pred_check
      _
    $region15: #{forward.1} parent=1 // pred_check_branch
      %36 = sbr.rel (0) target = $region17
    $region16: #{forward.1} parent=1 // pred_region
      _
    $region17: #{forward.1} parent=1 // pred_fallthru
      _
    // Predicated region
    $region18: #{forward.1} parent=1 // pred_check
      _
    $region19: #{forward.1} parent=1 // pred_check_branch
      %38 = sbr.rel (0) target = $region21
    $region20: #{forward.1} parent=1 // pred_region
      _
    $region21: #{forward.1} parent=1 // pred_fallthru
      _
    // Predicated region
    $region22: #{forward.1} parent=1 // pred_check
      _
    $region23: #{forward.1} parent=1 // pred_check_branch
      %40 = sbr.rel (0) target = $region25
    $region24: #{forward.1} parent=1 // pred_region
      _
    $region25: #{forward.1} parent=1 // pred_fallthru
      _
    // Predicated region
    $region26: #{forward.1} parent=1 // pred_check
      _
    $region27: #{forward.1} parent=1 // pred_check_branch
      %42 = sbr.rel (0) target = $region29
    $region28: #{forward.1} parent=1 // pred_region
      _
    $region29: #{forward.1} parent=1 // pred_fallthru
      _
    // Predicated region
    $region30: #{forward.1} parent=1 // pred_check
      _
    $region31: #{forward.1} parent=1 // pred_check_branch
      %44 = sbr.rel (0) target = $region33
    $region32: #{forward.1} parent=1 // pred_region
      _
    $region33: #{forward.1} parent=1 // pred_fallthru
      _
    // Predicated region
    $region34: #{forward.1} parent=1 // pred_check
      _
    $region35: #{forward.1} parent=1 // pred_check_branch
      %46 = sbr.rel (0) target = $region37
    $region36: #{forward.1} parent=1 // pred_region
      _
    $region37: #{forward.1} parent=1 // pred_fallthru
      _
    // Predicated region
    $region38: #{forward.1} parent=1 // pred_check
      _
    $region39: #{forward.1} parent=1 // pred_check_branch
      %48 = sbr.rel (0) target = $region41
    $region40: #{forward.1} parent=1 // pred_region
      _
    $region41: #{forward.1} parent=1 // pred_fallthru
      _
    // Predicated region
    $region42: #{forward.1} parent=1 // pred_check
      _
    $region43: #{forward.1} parent=1 // pred_check_branch
      %50 = sbr.rel (0) target = $region45
    $region44: #{forward.1} parent=1 // pred_region
      _
    $region45: #{forward.1} parent=1 // pred_fallthru
      _
    // Predicated region
    $region46: #{forward.1} parent=1 // pred_check
      _
    $region47: #{forward.1} parent=1 // pred_check_branch
      %52 = sbr.rel (0) target = $region49
    $region48: #{forward.1} parent=1 // pred_region
      _
    $region49: #{forward.1} parent=1 // pred_fallthru
      _
    // Predicated region
    $region50: #{forward.1} parent=1 // pred_check
      _
    $region51: #{forward.1} parent=1 // pred_check_branch
      %54 = sbr.rel (0) target = $region53
    $region52: #{forward.1} parent=1 // pred_region
      _
    $region53: #{forward.1} parent=1 // pred_fallthru
      _
    // Predicated region
    $region54: #{forward.1} parent=1 // pred_check
      _
    $region55: #{forward.1} parent=1 // pred_check_branch
      %56 = sbr.rel (0) target = $region57
    $region56: #{forward.1} parent=1 // pred_region
      _
    $region57: #{forward.1} parent=1 // pred_fallthru
      _
    // Predicated region
    $region58: #{forward.1} parent=1 // pred_check
      _
    $region59: #{forward.1} parent=1 // pred_check_branch
      %58 = sbr.rel (0) target = $region61
    $region60: #{forward.1} parent=1 // pred_region
      _
    $region61: #{forward.1} parent=1 // pred_fallthru
      _
    // Predicated region
    $region62: #{forward.1} parent=1 // pred_check
      _
    $region63: #{forward.1} parent=1 // pred_check_branch
      %60 = sbr.rel (0) target = $region65
    $region64: #{forward.1} parent=1 // pred_region
      _
    $region65: #{forward.1} parent=1 // pred_fallthru
      _
    // Predicated region
    $region66: #{forward.1} parent=1 // pred_check
      _
    $region67: #{forward.1} parent=1 // pred_check_branch
      %62 = sbr.rel (0) target = $region69
    $region68: #{forward.1} parent=1 // pred_region
      _
    $region69: #{forward.1} parent=1 // pred_fallthru
      _
    // Predicated region
    $region70: #{forward.1} parent=1 // pred_check
      _
    $region71: #{forward.1} parent=1 // pred_check_branch
      %64 = sbr.rel (0) target = $region73
    $region72: #{forward.1} parent=1 // pred_region
      _
    $region73: #{forward.1} parent=1 // pred_fallthru
      _
    // Predicated region
    $region74: #{forward.1} parent=1 // pred_check
      _
    $region75: #{forward.1} parent=1 // pred_check_branch
      %66 = sbr.rel (0) target = $region77
    $region76: #{forward.1} parent=1 // pred_region
      _
    $region77: #{forward.1} parent=1 // pred_fallthru
      _
    // Predicated region
    $region78: #{forward.1} parent=1 // pred_check
      _
    $region79: #{forward.1} parent=1 // pred_check_branch
      %68 = sbr.rel (0) target = $region81
    $region80: #{forward.1} parent=1 // pred_region
      _
    $region81: #{forward.1} parent=1 // pred_fallthru
      _
    %v70 = vld [vmem:[%s0] sm:$0xff]
    %v71 = vld [vmem:[%s0 + $0x8] sm:$0xff]
    %v72 = vld [vmem:[%s2] sm:$0x1]
    %v73 = vld [vmem:[%s3] sm:$0x1]
    %vm74 = vcmask 261120
    %v75 = vsel %vm74, %v70, 0.0
    %76 = vadd.xlane.f32.xlu0 %v75
    %v77 = vpop.xlane.xlu0 %76
    %v78 = vsel %vm74, %v71, 0.0
    %79 = vadd.xlane.f32.xlu0 %v78
    %v80 = vpop.xlane.xlu0 %79
    %v81 = vrcp.pop 32.0
    %v82 = vmul.f32 32.0, %v81
    %v83 = vsub.f32 1.0, %v82
    %v84 = vmul.f32 %v81, %v83
    %v85 = vadd.f32 %v81, %v84
    %vm86 = vweird.f32 %v81
    %v87 = vsel %vm86, %v81, %v85
    %v88 = vmul.f32 %v77, %v87
    %v89 = vmul.f32 %v80, %v87
    %v90 = vsub.f32 %v70, %v88
    %v91 = vsub.f32 %v71, %v89
    %v92 = vmul.f32 %v90, %v90
    %v93 = vmul.f32 %v91, %v91
    %v94 = vsel %vm74, %v92, 0.0
    %95 = vadd.xlane.f32.xlu0 %v94
    %v96 = vpop.xlane.xlu0 %95
    %v97 = vsel %vm74, %v93, 0.0
    %98 = vadd.xlane.f32.xlu0 %v97
    %v99 = vpop.xlane.xlu0 %98
    %v100 = vmul.f32 %v96, %v87
    %v101 = vmul.f32 %v99, %v87
    %v102 = vadd.f32 %v100, 1e-12
    %v103 = vadd.f32 %v101, 1e-12
    %v104 = vrsqrt.pop %v102
    %v105 = vmul.f32 %v104, %v102
    %v106 = vmul.f32 %v105, %v104
    %v107 = vmul.f32 0.5, %v106
    %v108 = vsub.f32 1.5, %v107
    %v109 = vmul.f32 %v104, %v108
    %vm110 = vweird.f32 %v102
    %vm111 = vweird.f32 %v104
    %vm112 = vmor %vm110, %vm111
    %v113 = vsel %vm112, %v104, %v109
    %v114 = vrsqrt.pop %v103
    %v115 = vmul.f32 %v114, %v103
    %v116 = vmul.f32 %v115, %v114
    %v117 = vmul.f32 0.5, %v116
    %v118 = vsub.f32 1.5, %v117
    %v119 = vmul.f32 %v114, %v118
    %vm120 = vweird.f32 %v103
    %vm121 = vweird.f32 %v114
    %vm122 = vmor %vm120, %vm121
    %v123 = vsel %vm122, %v114, %v119
    %v124 = vmul.f32 %v90, %v113
    %v125 = vmul.f32 %v91, %v123
    %v127 = vperm.slane %v72, 0
    %v129 = vmul.f32 %v124, %v127
    %v130 = vmul.f32 %v125, %v127
    %v132 = vperm.slane %v73, 0
    %v134 = vadd.f32 %v129, %v132
    %v135 = vadd.f32 %v130, %v132
    %v136 = vld [vmem:[%s1] sm:$0x1]
    %v137 = vld [vmem:[%s1 + $0x1] sm:$0x1]
    %v138 = vpack.c.bf16 %v135, %v134
    %v139 = vld [vmem:[%s4] sm:$0xf]
    %v140 = vld [vmem:[%s4 + $0x4] sm:$0xf]
    %v141 = vld [vmem:[%s4 + $0x8] sm:$0xf]
    %v142 = vld [vmem:[%s4 + $0xc] sm:$0xf]
    %v143 = vld [vmem:[%s5] sm:$0x1]
    %v145 = vperm.slane %v143, 0
    %v151 = vunpack.c.l.b16 %v139
    %v152 = vunpack.c.l.b16 %v140
    %v153 = vunpack.c.l.b16 %v141
    %v154 = vunpack.c.l.b16 %v142
    %v155 = vpack.c.b16 %v152, %v151
    %v156 = vpack.c.b16 %v154, %v153
    %v160 = vsel %vm74, %v138, 0
    %162 = vmatpush.bf16.msra.mxu0 0
    %163 = vmatpush.bf16.msra.mxu0 0
    %164 = vmatpush.bf16.msra.mxu0 0
    %165 = vmatpush.bf16.msra.mxu0 0
    %166 = vmatpush.bf16.msra.mxu0 0
    %167 = vmatpush.bf16.msra.mxu0 0
    %168 = vmatpush.bf16.msra.mxu0 %v156
    %169 = vmatpush.bf16.msra.mxu0 %v155
    %170 = vmatmul.bf16.gmra.mxu0 %v160
    %v171 = vpop.f32.mrf.mxu0
    %v172 = vadd.f32 %v145, %v171
    %v173 = vpop.f32.mrf.mxu0
    %v174 = vadd.f32 %v145, %v173
    %175 = vdwg.mxu0
    %178 = vrot.lane.b32.xlu0 %v172, 112
    %v179 = vpop.permute.xlu0 %178
    %180 = vrot.lane.b32.xlu0 %v174, 112
    %v181 = vpop.permute.xlu0 %180
    %v184 = vpack.c.bf16 %v172, %v172
    %v185 = vpack.c.bf16 %v174, %v174
    %v186 = vpack.c.bf16 %v179, %v179
    %v187 = vpack.c.bf16 %v181, %v181
    %v189 = vunpack.c.l.b16 %v184
    %v190 = vpack.c.b16 %v189, %v189
    %191 = vrot.lane.b32.xlu0 %v190, 96
    %v192 = vpop.permute.xlu0 %191
    %vm193 = vcmask 130048
    %v195 = vsel %vm193, %v184, 0
    %v198 = vsel %vm193, %v192, 0
    %200 = vmatpush.bf16.xpose.msra.mxu0 0
    %201 = vmatpush.bf16.xpose.msra.mxu0 0
    %202 = vmatpush.bf16.xpose.msra.mxu0 0
    %203 = vmatpush.bf16.xpose.msra.mxu0 0
    %204 = vmatpush.bf16.xpose.msra.mxu0 0
    %205 = vmatpush.bf16.xpose.msra.mxu0 0
    %206 = vmatpush.bf16.xpose.msra.mxu0 0
    %207 = vmatpush.bf16.xpose.msra.mxu0 %v198
    %208 = vmatmul.bf16.gmra.mxu0 %v195
    %v209 = vpop.f32.mrf.mxu0
    %v210 = vadd.f32 0.0, %v209
    %v211 = vpop.f32.mrf.mxu0
    %212 = vdwg.mxu0
    %v214 = vunpack.c.l.b16 %v185
    %v215 = vpack.c.b16 %v214, %v214
    %216 = vrot.lane.b32.xlu0 %v215, 96
    %v217 = vpop.permute.xlu0 %216
    %v219 = vsel %vm193, %v185, 0
    %v222 = vsel %vm193, %v217, 0
    %224 = vmatpush.bf16.xpose.msra.mxu0 0
    %225 = vmatpush.bf16.xpose.msra.mxu0 0
    %226 = vmatpush.bf16.xpose.msra.mxu0 0
    %227 = vmatpush.bf16.xpose.msra.mxu0 0
    %228 = vmatpush.bf16.xpose.msra.mxu0 0
    %229 = vmatpush.bf16.xpose.msra.mxu0 0
    %230 = vmatpush.bf16.xpose.msra.mxu0 0
    %231 = vmatpush.bf16.xpose.msra.mxu0 %v222
    %232 = vmatmul.bf16.gmra.mxu0 %v219
    %v233 = vpop.f32.mrf.mxu0
    %v234 = vadd.f32 0.0, %v233
    %v235 = vpop.f32.mrf.mxu0
    %236 = vdwg.mxu0
    %v238 = vunpack.c.l.b16 %v186
    %v239 = vpack.c.b16 %v238, %v238
    %240 = vrot.lane.b32.xlu0 %v239, 96
    %v241 = vpop.permute.xlu0 %240
    %v243 = vsel %vm193, %v186, 0
    %v246 = vsel %vm193, %v241, 0
    %248 = vmatpush.bf16.xpose.msra.mxu0 0
    %249 = vmatpush.bf16.xpose.msra.mxu0 0
    %250 = vmatpush.bf16.xpose.msra.mxu0 0
    %251 = vmatpush.bf16.xpose.msra.mxu0 0
    %252 = vmatpush.bf16.xpose.msra.mxu0 0
    %253 = vmatpush.bf16.xpose.msra.mxu0 0
    %254 = vmatpush.bf16.xpose.msra.mxu0 0
    %255 = vmatpush.bf16.xpose.msra.mxu0 %v246
    %256 = vmatmul.bf16.gmra.mxu0 %v243
    %v257 = vpop.f32.mrf.mxu0
    %v258 = vadd.f32 0.0, %v257
    %v259 = vpop.f32.mrf.mxu0
    %260 = vdwg.mxu0
    %v262 = vunpack.c.l.b16 %v187
    %v263 = vpack.c.b16 %v262, %v262
    %264 = vrot.lane.b32.xlu0 %v263, 96
    %v265 = vpop.permute.xlu0 %264
    %v267 = vsel %vm193, %v187, 0
    %v270 = vsel %vm193, %v265, 0
    %272 = vmatpush.bf16.xpose.msra.mxu0 0
    %273 = vmatpush.bf16.xpose.msra.mxu0 0
    %274 = vmatpush.bf16.xpose.msra.mxu0 0
    %275 = vmatpush.bf16.xpose.msra.mxu0 0
    %276 = vmatpush.bf16.xpose.msra.mxu0 0
    %277 = vmatpush.bf16.xpose.msra.mxu0 0
    %278 = vmatpush.bf16.xpose.msra.mxu0 0
    %279 = vmatpush.bf16.xpose.msra.mxu0 %v270
    %280 = vmatmul.bf16.gmra.mxu0 %v267
    %v281 = vpop.f32.mrf.mxu0
    %v282 = vadd.f32 0.0, %v281
    %v283 = vpop.f32.mrf.mxu0
    %284 = vdwg.mxu0
    %v285 = vmul.f32 %v210, 0.25
    %v286 = vmul.f32 %v234, 0.25
    %v287 = vmul.f32 %v258, 0.25
    %v288 = vmul.f32 %v282, 0.25
    %v291 = vperm.slane %v136, 0
    %v292 = vperm.slane %v137, 0
    %v295 = vadd.f32 %v285, %v291
    %v296 = vadd.f32 %v286, %v292
    %v297 = vadd.f32 %v287, %v291
    %v298 = vadd.f32 %v288, %v292
    %vm299 = vcmask 64512
    %v300 = vsel %vm299, %v295, -inf
    %301 = vmax.xlane.f32.xlu0 %v300
    %v302 = vpop.xlane.xlu0 %301
    %v303 = vsel %vm299, %v296, -inf
    %304 = vmax.xlane.f32.xlu0 %v303
    %v305 = vpop.xlane.xlu0 %304
    %v306 = vsel %vm299, %v297, -inf
    %307 = vmax.xlane.f32.xlu0 %v306
    %v308 = vpop.xlane.xlu0 %307
    %v309 = vsel %vm299, %v298, -inf
    %310 = vmax.xlane.f32.xlu0 %v309
    %v311 = vpop.xlane.xlu0 %310
    %v312 = vsub.f32 %v295, %v302
    %v313 = vsub.f32 %v296, %v305
    %v314 = vsub.f32 %v297, %v308
    %v315 = vsub.f32 %v298, %v311
    %v316 = vmul.f32 %v312, 1.442695
    %v317 = vpow.pop %v316
    %v318 = vmul.f32 %v313, 1.442695
    %v319 = vpow.pop %v318
    %v320 = vmul.f32 %v314, 1.442695
    %v321 = vpow.pop %v320
    %v322 = vmul.f32 %v315, 1.442695
    %v323 = vpow.pop %v322
    %v324 = vsel %vm299, %v317, 0.0
    %325 = vadd.xlane.f32.xlu0 %v324
    %v326 = vpop.xlane.xlu0 %325
    %v327 = vsel %vm299, %v319, 0.0
    %328 = vadd.xlane.f32.xlu0 %v327
    %v329 = vpop.xlane.xlu0 %328
    %v330 = vsel %vm299, %v321, 0.0
    %331 = vadd.xlane.f32.xlu0 %v330
    %v332 = vpop.xlane.xlu0 %331
    %v333 = vsel %vm299, %v323, 0.0
    %334 = vadd.xlane.f32.xlu0 %v333
    %v335 = vpop.xlane.xlu0 %334
    %v336 = vrcp.pop %v326
    %v337 = vrcp.pop %v329
    %v338 = vrcp.pop %v332
    %v339 = vrcp.pop %v335
    %v340 = vmul.f32 %v317, %v336
    %v341 = vmul.f32 %v319, %v337
    %v342 = vmul.f32 %v321, %v338
    %v343 = vmul.f32 %v323, %v339
    %v344 = vpack.c.bf16 %v340, %v340
    %v345 = vpack.c.bf16 %v341, %v341
    %v346 = vpack.c.bf16 %v342, %v342
    %v347 = vpack.c.bf16 %v343, %v343
    %348 = vrot.lane.b32.xlu0 %v190, 64
    %v349 = vpop.permute.xlu0 %348
    %v351 = vsel %vm299, %v344, 0
    %vm353 = vcmask 1043456
    %v355 = vsel %vm353, %v349, 0
    %357 = vmatpush.bf16.msra.mxu0 0
    %358 = vmatpush.bf16.msra.mxu0 0
    %359 = vmatpush.bf16.msra.mxu0 0
    %360 = vmatpush.bf16.msra.mxu0 0
    %361 = vmatpush.bf16.msra.mxu0 0
    %362 = vmatpush.bf16.msra.mxu0 0
    %363 = vmatpush.bf16.msra.mxu0 0
    %364 = vmatpush.bf16.msra.mxu0 %v355
    %365 = vmatmul.bf16.gmra.mxu0 %v351
    %v366 = vpop.f32.mrf.mxu0
    %v367 = vadd.f32 0.0, %v366
    %v368 = vpop.f32.mrf.mxu0
    %369 = vdwg.mxu0
    %370 = vrot.lane.b32.xlu0 %v215, 64
    %v371 = vpop.permute.xlu0 %370
    %v373 = vsel %vm299, %v345, 0
    %v376 = vsel %vm353, %v371, 0
    %378 = vmatpush.bf16.msra.mxu0 0
    %379 = vmatpush.bf16.msra.mxu0 0
    %380 = vmatpush.bf16.msra.mxu0 0
    %381 = vmatpush.bf16.msra.mxu0 0
    %382 = vmatpush.bf16.msra.mxu0 0
    %383 = vmatpush.bf16.msra.mxu0 0
    %384 = vmatpush.bf16.msra.mxu0 0
    %385 = vmatpush.bf16.msra.mxu0 %v376
    %386 = vmatmul.bf16.gmra.mxu0 %v373
    %v387 = vpop.f32.mrf.mxu0
    %v388 = vadd.f32 0.0, %v387
    %v389 = vpop.f32.mrf.mxu0
    %390 = vdwg.mxu0
    %391 = vrot.lane.b32.xlu0 %v239, 64
    %v392 = vpop.permute.xlu0 %391
    %v394 = vsel %vm299, %v346, 0
    %v397 = vsel %vm353, %v392, 0
    %399 = vmatpush.bf16.msra.mxu0 0
    %400 = vmatpush.bf16.msra.mxu0 0
    %401 = vmatpush.bf16.msra.mxu0 0
    %402 = vmatpush.bf16.msra.mxu0 0
    %403 = vmatpush.bf16.msra.mxu0 0
    %404 = vmatpush.bf16.msra.mxu0 0
    %405 = vmatpush.bf16.msra.mxu0 0
    %406 = vmatpush.bf16.msra.mxu0 %v397
    %407 = vmatmul.bf16.gmra.mxu0 %v394
    %v408 = vpop.f32.mrf.mxu0
    %v409 = vadd.f32 0.0, %v408
    %v410 = vpop.f32.mrf.mxu0
    %411 = vdwg.mxu0
    %412 = vrot.lane.b32.xlu0 %v263, 64
    %v413 = vpop.permute.xlu0 %412
    %v415 = vsel %vm299, %v347, 0
    %v418 = vsel %vm353, %v413, 0
    %420 = vmatpush.bf16.msra.mxu0 0
    %421 = vmatpush.bf16.msra.mxu0 0
    %422 = vmatpush.bf16.msra.mxu0 0
    %423 = vmatpush.bf16.msra.mxu0 0
    %424 = vmatpush.bf16.msra.mxu0 0
    %425 = vmatpush.bf16.msra.mxu0 0
    %426 = vmatpush.bf16.msra.mxu0 0
    %427 = vmatpush.bf16.msra.mxu0 %v418
    %428 = vmatmul.bf16.gmra.mxu0 %v415
    %v429 = vpop.f32.mrf.mxu0
    %v430 = vadd.f32 0.0, %v429
    %v431 = vpop.f32.mrf.mxu0
    %432 = vdwg.mxu0
    %435 = vrot.lane.b32.xlu0 %v409, 16
    %v436 = vpop.permute.xlu0 %435
    %437 = vrot.lane.b32.xlu0 %v430, 16
    %v438 = vpop.permute.xlu0 %437
    %v441 = vsel %vm193, %v367, %v436
    %v442 = vsel %vm193, %v388, %v438
    %v443 = vpack.c.bf16 %v442, %v441
    %v444 = vld [vmem:[%s6] sm:$0xf]
    %v445 = vld [vmem:[%s6 + $0x4] sm:$0xf]
    %v446 = vld [vmem:[%s6 + $0x8] sm:$0xf]
    %v447 = vld [vmem:[%s6 + $0xc] sm:$0xf]
    %v448 = vld [vmem:[%s7] sm:$0x1]
    %v450 = vperm.slane %v448, 0
    %v456 = vunpack.c.l.b16 %v444
    %v457 = vunpack.c.l.b16 %v445
    %v458 = vunpack.c.l.b16 %v446
    %v459 = vunpack.c.l.b16 %v447
    %v460 = vpack.c.b16 %v457, %v456
    %v461 = vpack.c.b16 %v459, %v458
    %v465 = vsel %vm74, %v443, 0
    %467 = vmatpush.bf16.msra.mxu0 0
    %468 = vmatpush.bf16.msra.mxu0 0
    %469 = vmatpush.bf16.msra.mxu0 0
    %470 = vmatpush.bf16.msra.mxu0 0
    %471 = vmatpush.bf16.msra.mxu0 0
    %472 = vmatpush.bf16.msra.mxu0 0
    %473 = vmatpush.bf16.msra.mxu0 %v461
    %474 = vmatpush.bf16.msra.mxu0 %v460
    %475 = vmatmul.bf16.gmra.mxu0 %v465
    %v476 = vpop.f32.mrf.mxu0
    %v477 = vadd.f32 %v450, %v476
    %v478 = vpop.f32.mrf.mxu0
    %v479 = vadd.f32 %v450, %v478
    %480 = vdwg.mxu0
    %v481 = vadd.f32 %v134, %v477
    %v482 = vadd.f32 %v135, %v479
    %v483 = vld [vmem:[%s8] sm:$0x1]
    %v484 = vld [vmem:[%s9] sm:$0x1]
    %v485 = vsel %vm74, %v481, 0.0
    %486 = vadd.xlane.f32.xlu0 %v485
    %v487 = vpop.xlane.xlu0 %486
    %v488 = vsel %vm74, %v482, 0.0
    %489 = vadd.xlane.f32.xlu0 %v488
    %v490 = vpop.xlane.xlu0 %489
    %v491 = vmul.f32 %v487, %v87
    %v492 = vmul.f32 %v490, %v87
    %v493 = vsub.f32 %v481, %v491
    %v494 = vsub.f32 %v482, %v492
    %v495 = vmul.f32 %v493, %v493
    %v496 = vmul.f32 %v494, %v494
    %v497 = vsel %vm74, %v495, 0.0
    %498 = vadd.xlane.f32.xlu0 %v497
    %v499 = vpop.xlane.xlu0 %498
    %v500 = vsel %vm74, %v496, 0.0
    %501 = vadd.xlane.f32.xlu0 %v500
    %v502 = vpop.xlane.xlu0 %501
    %v503 = vmul.f32 %v499, %v87
    %v504 = vmul.f32 %v502, %v87
    %v505 = vadd.f32 %v503, 1e-12
    %v506 = vadd.f32 %v504, 1e-12
    %v507 = vrsqrt.pop %v505
    %v508 = vmul.f32 %v507, %v505
    %v509 = vmul.f32 %v508, %v507
    %v510 = vmul.f32 0.5, %v509
    %v511 = vsub.f32 1.5, %v510
    %v512 = vmul.f32 %v507, %v511
    %vm513 = vweird.f32 %v505
    %vm514 = vweird.f32 %v507
    %vm515 = vmor %vm513, %vm514
    %v516 = vsel %vm515, %v507, %v512
    %v517 = vrsqrt.pop %v506
    %v518 = vmul.f32 %v517, %v506
    %v519 = vmul.f32 %v518, %v517
    %v520 = vmul.f32 0.5, %v519
    %v521 = vsub.f32 1.5, %v520
    %v522 = vmul.f32 %v517, %v521
    %vm523 = vweird.f32 %v506
    %vm524 = vweird.f32 %v517
    %vm525 = vmor %vm523, %vm524
    %v526 = vsel %vm525, %v517, %v522
    %v527 = vmul.f32 %v493, %v516
    %v528 = vmul.f32 %v494, %v526
    %v530 = vperm.slane %v483, 0
    %v532 = vmul.f32 %v527, %v530
    %v533 = vmul.f32 %v528, %v530
    %v535 = vperm.slane %v484, 0
    %v537 = vadd.f32 %v532, %v535
    %v538 = vadd.f32 %v533, %v535
    %v539 = vpack.c.bf16 %v538, %v537
    %v540 = vld [vmem:[%s10] sm:$0xf]
    %v541 = vld [vmem:[%s10 + $0x4] sm:$0xf]
    %v542 = vld [vmem:[%s10 + $0x8] sm:$0xf]
    %v543 = vld [vmem:[%s10 + $0xc] sm:$0xf]
    %v544 = vld [vmem:[%s11] sm:$0x1]
    %v546 = vperm.slane %v544, 0
    %v552 = vunpack.c.l.b16 %v540
    %v553 = vunpack.c.l.b16 %v541
    %v554 = vunpack.c.l.b16 %v542
    %v555 = vunpack.c.l.b16 %v543
    %v556 = vpack.c.b16 %v553, %v552
    %v557 = vpack.c.b16 %v555, %v554
    %v561 = vsel %vm74, %v539, 0
    %563 = vmatpush.bf16.msra.mxu0 0
    %564 = vmatpush.bf16.msra.mxu0 0
    %565 = vmatpush.bf16.msra.mxu0 0
    %566 = vmatpush.bf16.msra.mxu0 0
    %567 = vmatpush.bf16.msra.mxu0 0
    %568 = vmatpush.bf16.msra.mxu0 0
    %569 = vmatpush.bf16.msra.mxu0 %v557
    %570 = vmatpush.bf16.msra.mxu0 %v556
    %571 = vmatmul.bf16.gmra.mxu0 %v561
    %v572 = vpop.f32.mrf.mxu0
    %v573 = vadd.f32 %v546, %v572
    %v574 = vpop.f32.mrf.mxu0
    %v575 = vadd.f32 %v546, %v574
    %576 = vdwg.mxu0
    %v577 = vmul.f32 %v573, 0.5
    %v578 = vmul.f32 %v575, 0.5
    %v579 = vmul.f32 %v573, 0.044715
    %v580 = vmul.f32 %v575, 0.044715
    %v581 = vmul.f32 %v579, %v573
    %v582 = vmul.f32 %v580, %v575
    %v583 = vmul.f32 %v581, %v573
    %v584 = vmul.f32 %v582, %v575
    %v585 = vadd.f32 %v573, %v583
    %v586 = vadd.f32 %v575, %v584
    %v587 = vmul.f32 %v585, 0.7978846
    %v588 = vmul.f32 %v586, 0.7978846
    %v589 = vtanh.pop %v587
    %v590 = vtanh.pop %v588
    %v591 = vadd.f32 %v589, 1.0
    %v592 = vadd.f32 %v590, 1.0
    %v593 = vmul.f32 %v577, %v591
    %v594 = vmul.f32 %v578, %v592
    %v595 = vpack.c.bf16 %v594, %v593
    %v596 = vld [vmem:[%s12] sm:$0xf]
    %v597 = vld [vmem:[%s12 + $0x4] sm:$0xf]
    %v598 = vld [vmem:[%s12 + $0x8] sm:$0xf]
    %v599 = vld [vmem:[%s12 + $0xc] sm:$0xf]
    %v600 = vld [vmem:[%s12 + $0x10] sm:$0xf]
    %v601 = vld [vmem:[%s12 + $0x14] sm:$0xf]
    %v602 = vld [vmem:[%s12 + $0x18] sm:$0xf]
    %v603 = vld [vmem:[%s12 + $0x1c] sm:$0xf]
    %v604 = vld [vmem:[%s13] sm:$0x1]
    %v606 = vperm.slane %v604, 0
    %v616 = vunpack.c.l.b16 %v596
    %v617 = vunpack.c.l.b16 %v597
    %v618 = vunpack.c.l.b16 %v598
    %v619 = vunpack.c.l.b16 %v599
    %v620 = vunpack.c.l.b16 %v600
    %v621 = vunpack.c.l.b16 %v601
    %v622 = vunpack.c.l.b16 %v602
    %v623 = vunpack.c.l.b16 %v603
    %v624 = vpack.c.b16 %v617, %v616
    %v625 = vpack.c.b16 %v619, %v618
    %v626 = vpack.c.b16 %v621, %v620
    %v627 = vpack.c.b16 %v623, %v622
    %vm632 = vcmask 523264
    %v634 = vsel %vm632, %v595, 0
    %636 = vmatpush.bf16.msra.mxu0 0
    %637 = vmatpush.bf16.msra.mxu0 0
    %638 = vmatpush.bf16.msra.mxu0 0
    %639 = vmatpush.bf16.msra.mxu0 0
    %640 = vmatpush.bf16.msra.mxu0 %v627
    %641 = vmatpush.bf16.msra.mxu0 %v626
    %642 = vmatpush.bf16.msra.mxu0 %v625
    %643 = vmatpush.bf16.msra.mxu0 %v624
    %644 = vmatmul.bf16.gmra.mxu0 %v634
    %v645 = vpop.f32.mrf.mxu0
    %v646 = vadd.f32 %v606, %v645
    %v647 = vpop.f32.mrf.mxu0
    %v648 = vadd.f32 %v606, %v647
    %649 = vdwg.mxu0
    %v650 = vadd.f32 %v537, %v646
    %v651 = vadd.f32 %v538, %v648
    %v652 = vld [vmem:[%s14] sm:$0x1]
    %v653 = vld [vmem:[%s15] sm:$0x1]
    %v654 = vsel %vm74, %v650, 0.0
    %655 = vadd.xlane.f32.xlu0 %v654
    %v656 = vpop.xlane.xlu0 %655
    %v657 = vsel %vm74, %v651, 0.0
    %658 = vadd.xlane.f32.xlu0 %v657
    %v659 = vpop.xlane.xlu0 %658
    %v660 = vmul.f32 %v656, %v87
    %v661 = vmul.f32 %v659, %v87
    %v662 = vsub.f32 %v650, %v660
    %v663 = vsub.f32 %v651, %v661
    %v664 = vmul.f32 %v662, %v662
    %v665 = vmul.f32 %v663, %v663
    %v666 = vsel %vm74, %v664, 0.0
    %667 = vadd.xlane.f32.xlu0 %v666
    %v668 = vpop.xlane.xlu0 %667
    %v669 = vsel %vm74, %v665, 0.0
    %670 = vadd.xlane.f32.xlu0 %v669
    %v671 = vpop.xlane.xlu0 %670
    %v672 = vmul.f32 %v668, %v87
    %v673 = vmul.f32 %v671, %v87
    %v674 = vadd.f32 %v672, 1e-12
    %v675 = vadd.f32 %v673, 1e-12
    %v676 = vrsqrt.pop %v674
    %v677 = vmul.f32 %v676, %v674
    %v678 = vmul.f32 %v677, %v676
    %v679 = vmul.f32 0.5, %v678
    %v680 = vsub.f32 1.5, %v679
    %v681 = vmul.f32 %v676, %v680
    %vm682 = vweird.f32 %v674
    %vm683 = vweird.f32 %v676
    %vm684 = vmor %vm682, %vm683
    %v685 = vsel %vm684, %v676, %v681
    %v686 = vrsqrt.pop %v675
    %v687 = vmul.f32 %v686, %v675
    %v688 = vmul.f32 %v687, %v686
    %v689 = vmul.f32 0.5, %v688
    %v690 = vsub.f32 1.5, %v689
    %v691 = vmul.f32 %v686, %v690
    %vm692 = vweird.f32 %v675
    %vm693 = vweird.f32 %v686
    %vm694 = vmor %vm692, %vm693
    %v695 = vsel %vm694, %v686, %v691
    %v696 = vmul.f32 %v662, %v685
    %v697 = vmul.f32 %v663, %v695
    %v699 = vperm.slane %v652, 0
    %v701 = vmul.f32 %v696, %v699
    %v702 = vmul.f32 %v697, %v699
    %v704 = vperm.slane %v653, 0
    %v706 = vadd.f32 %v701, %v704
    %v707 = vadd.f32 %v702, %v704
    %v708 = vpack.c.bf16 %v707, %v706
    %s709 = scalar_lea.vmem %s4, 16
    %v710 = vld [vmem:[%s709] sm:$0xf]
    %v711 = vld [vmem:[%s709 + $0x4] sm:$0xf]
    %v712 = vld [vmem:[%s709 + $0x8] sm:$0xf]
    %v713 = vld [vmem:[%s709 + $0xc] sm:$0xf]
    %s714 = scalar_lea.vmem %s5, 1
    %v715 = vld [vmem:[%s714] sm:$0x1]
    %v717 = vperm.slane %v715, 0
    %v723 = vunpack.c.l.b16 %v710
    %v724 = vunpack.c.l.b16 %v711
    %v725 = vunpack.c.l.b16 %v712
    %v726 = vunpack.c.l.b16 %v713
    %v727 = vpack.c.b16 %v724, %v723
    %v728 = vpack.c.b16 %v726, %v725
    %v732 = vsel %vm74, %v708, 0
    %734 = vmatpush.bf16.msra.mxu0 0
    %735 = vmatpush.bf16.msra.mxu0 0
    %736 = vmatpush.bf16.msra.mxu0 0
    %737 = vmatpush.bf16.msra.mxu0 0
    %738 = vmatpush.bf16.msra.mxu0 0
    %739 = vmatpush.bf16.msra.mxu0 0
    %740 = vmatpush.bf16.msra.mxu0 %v728
    %741 = vmatpush.bf16.msra.mxu0 %v727
    %742 = vmatmul.bf16.gmra.mxu0 %v732
    %v743 = vpop.f32.mrf.mxu0
    %v744 = vadd.f32 %v717, %v743
    %v745 = vpop.f32.mrf.mxu0
    %v746 = vadd.f32 %v717, %v745
    %747 = vdwg.mxu0
    %750 = vrot.lane.b32.xlu0 %v744, 112
    %v751 = vpop.permute.xlu0 %750
    %752 = vrot.lane.b32.xlu0 %v746, 112
    %v753 = vpop.permute.xlu0 %752
    %v756 = vpack.c.bf16 %v744, %v744
    %v757 = vpack.c.bf16 %v746, %v746
    %v758 = vpack.c.bf16 %v751, %v751
    %v759 = vpack.c.bf16 %v753, %v753
    %v761 = vunpack.c.l.b16 %v756
    %v762 = vpack.c.b16 %v761, %v761
    %763 = vrot.lane.b32.xlu0 %v762, 96
    %v764 = vpop.permute.xlu0 %763
    %v766 = vsel %vm193, %v756, 0
    %v769 = vsel %vm193, %v764, 0
    %771 = vmatpush.bf16.xpose.msra.mxu0 0
    %772 = vmatpush.bf16.xpose.msra.mxu0 0
    %773 = vmatpush.bf16.xpose.msra.mxu0 0
    %774 = vmatpush.bf16.xpose.msra.mxu0 0
    %775 = vmatpush.bf16.xpose.msra.mxu0 0
    %776 = vmatpush.bf16.xpose.msra.mxu0 0
    %777 = vmatpush.bf16.xpose.msra.mxu0 0
    %778 = vmatpush.bf16.xpose.msra.mxu0 %v769
    %779 = vmatmul.bf16.gmra.mxu0 %v766
    %v780 = vpop.f32.mrf.mxu0
    %v781 = vadd.f32 0.0, %v780
    %v782 = vpop.f32.mrf.mxu0
    %783 = vdwg.mxu0
    %v785 = vunpack.c.l.b16 %v757
    %v786 = vpack.c.b16 %v785, %v785
    %787 = vrot.lane.b32.xlu0 %v786, 96
    %v788 = vpop.permute.xlu0 %787
    %v790 = vsel %vm193, %v757, 0
    %v793 = vsel %vm193, %v788, 0
    %795 = vmatpush.bf16.xpose.msra.mxu0 0
    %796 = vmatpush.bf16.xpose.msra.mxu0 0
    %797 = vmatpush.bf16.xpose.msra.mxu0 0
    %798 = vmatpush.bf16.xpose.msra.mxu0 0
    %799 = vmatpush.bf16.xpose.msra.mxu0 0
    %800 = vmatpush.bf16.xpose.msra.mxu0 0
    %801 = vmatpush.bf16.xpose.msra.mxu0 0
    %802 = vmatpush.bf16.xpose.msra.mxu0 %v793
    %803 = vmatmul.bf16.gmra.mxu0 %v790
    %v804 = vpop.f32.mrf.mxu0
    %v805 = vadd.f32 0.0, %v804
    %v806 = vpop.f32.mrf.mxu0
    %807 = vdwg.mxu0
    %v809 = vunpack.c.l.b16 %v758
    %v810 = vpack.c.b16 %v809, %v809
    %811 = vrot.lane.b32.xlu0 %v810, 96
    %v812 = vpop.permute.xlu0 %811
    %v814 = vsel %vm193, %v758, 0
    %v817 = vsel %vm193, %v812, 0
    %819 = vmatpush.bf16.xpose.msra.mxu0 0
    %820 = vmatpush.bf16.xpose.msra.mxu0 0
    %821 = vmatpush.bf16.xpose.msra.mxu0 0
    %822 = vmatpush.bf16.xpose.msra.mxu0 0
    %823 = vmatpush.bf16.xpose.msra.mxu0 0
    %824 = vmatpush.bf16.xpose.msra.mxu0 0
    %825 = vmatpush.bf16.xpose.msra.mxu0 0
    %826 = vmatpush.bf16.xpose.msra.mxu0 %v817
    %827 = vmatmul.bf16.gmra.mxu0 %v814
    %v828 = vpop.f32.mrf.mxu0
    %v829 = vadd.f32 0.0, %v828
    %v830 = vpop.f32.mrf.mxu0
    %831 = vdwg.mxu0
    %v833 = vunpack.c.l.b16 %v759
    %v834 = vpack.c.b16 %v833, %v833
    %835 = vrot.lane.b32.xlu0 %v834, 96
    %v836 = vpop.permute.xlu0 %835
    %v838 = vsel %vm193, %v759, 0
    %v841 = vsel %vm193, %v836, 0
    %843 = vmatpush.bf16.xpose.msra.mxu0 0
    %844 = vmatpush.bf16.xpose.msra.mxu0 0
    %845 = vmatpush.bf16.xpose.msra.mxu0 0
    %846 = vmatpush.bf16.xpose.msra.mxu0 0
    %847 = vmatpush.bf16.xpose.msra.mxu0 0
    %848 = vmatpush.bf16.xpose.msra.mxu0 0
    %849 = vmatpush.bf16.xpose.msra.mxu0 0
    %850 = vmatpush.bf16.xpose.msra.mxu0 %v841
    %851 = vmatmul.bf16.gmra.mxu0 %v838
    %v852 = vpop.f32.mrf.mxu0
    %v853 = vadd.f32 0.0, %v852
    %v854 = vpop.f32.mrf.mxu0
    %855 = vdwg.mxu0
    %v856 = vmul.f32 %v781, 0.25
    %v857 = vmul.f32 %v805, 0.25
    %v858 = vmul.f32 %v829, 0.25
    %v859 = vmul.f32 %v853, 0.25
    %v860 = vadd.f32 %v856, %v291
    %v861 = vadd.f32 %v857, %v292
    %v862 = vadd.f32 %v858, %v291
    %v863 = vadd.f32 %v859, %v292
    %v864 = vsel %vm299, %v860, -inf
    %865 = vmax.xlane.f32.xlu0 %v864
    %v866 = vpop.xlane.xlu0 %865
    %v867 = vsel %vm299, %v861, -inf
    %868 = vmax.xlane.f32.xlu0 %v867
    %v869 = vpop.xlane.xlu0 %868
    %v870 = vsel %vm299, %v862, -inf
    %871 = vmax.xlane.f32.xlu0 %v870
    %v872 = vpop.xlane.xlu0 %871
    %v873 = vsel %vm299, %v863, -inf
    %874 = vmax.xlane.f32.xlu0 %v873
    %v875 = vpop.xlane.xlu0 %874
    %v876 = vsub.f32 %v860, %v866
    %v877 = vsub.f32 %v861, %v869
    %v878 = vsub.f32 %v862, %v872
    %v879 = vsub.f32 %v863, %v875
    %v880 = vmul.f32 %v876, 1.442695
    %v881 = vpow.pop %v880
    %v882 = vmul.f32 %v877, 1.442695
    %v883 = vpow.pop %v882
    %v884 = vmul.f32 %v878, 1.442695
    %v885 = vpow.pop %v884
    %v886 = vmul.f32 %v879, 1.442695
    %v887 = vpow.pop %v886
    %v888 = vsel %vm299, %v881, 0.0
    %889 = vadd.xlane.f32.xlu0 %v888
    %v890 = vpop.xlane.xlu0 %889
    %v891 = vsel %vm299, %v883, 0.0
    %892 = vadd.xlane.f32.xlu0 %v891
    %v893 = vpop.xlane.xlu0 %892
    %v894 = vsel %vm299, %v885, 0.0
    %895 = vadd.xlane.f32.xlu0 %v894
    %v896 = vpop.xlane.xlu0 %895
    %v897 = vsel %vm299, %v887, 0.0
    %898 = vadd.xlane.f32.xlu0 %v897
    %v899 = vpop.xlane.xlu0 %898
    %v900 = vrcp.pop %v890
    %v901 = vrcp.pop %v893
    %v902 = vrcp.pop %v896
    %v903 = vrcp.pop %v899
    %v904 = vmul.f32 %v881, %v900
    %v905 = vmul.f32 %v883, %v901
    %v906 = vmul.f32 %v885, %v902
    %v907 = vmul.f32 %v887, %v903
    %v908 = vpack.c.bf16 %v904, %v904
    %v909 = vpack.c.bf16 %v905, %v905
    %v910 = vpack.c.bf16 %v906, %v906
    %v911 = vpack.c.bf16 %v907, %v907
    %912 = vrot.lane.b32.xlu0 %v762, 64
    %v913 = vpop.permute.xlu0 %912
    %v915 = vsel %vm299, %v908, 0
    %v918 = vsel %vm353, %v913, 0
    %920 = vmatpush.bf16.msra.mxu0 0
    %921 = vmatpush.bf16.msra.mxu0 0
    %922 = vmatpush.bf16.msra.mxu0 0
    %923 = vmatpush.bf16.msra.mxu0 0
    %924 = vmatpush.bf16.msra.mxu0 0
    %925 = vmatpush.bf16.msra.mxu0 0
    %926 = vmatpush.bf16.msra.mxu0 0
    %927 = vmatpush.bf16.msra.mxu0 %v918
    %928 = vmatmul.bf16.gmra.mxu0 %v915
    %v929 = vpop.f32.mrf.mxu0
    %v930 = vadd.f32 0.0, %v929
    %v931 = vpop.f32.mrf.mxu0
    %932 = vdwg.mxu0
    %933 = vrot.lane.b32.xlu0 %v786, 64
    %v934 = vpop.permute.xlu0 %933
    %v936 = vsel %vm299, %v909, 0
    %v939 = vsel %vm353, %v934, 0
    %941 = vmatpush.bf16.msra.mxu0 0
    %942 = vmatpush.bf16.msra.mxu0 0
    %943 = vmatpush.bf16.msra.mxu0 0
    %944 = vmatpush.bf16.msra.mxu0 0
    %945 = vmatpush.bf16.msra.mxu0 0
    %946 = vmatpush.bf16.msra.mxu0 0
    %947 = vmatpush.bf16.msra.mxu0 0
    %948 = vmatpush.bf16.msra.mxu0 %v939
    %949 = vmatmul.bf16.gmra.mxu0 %v936
    %v950 = vpop.f32.mrf.mxu0
    %v951 = vadd.f32 0.0, %v950
    %v952 = vpop.f32.mrf.mxu0
    %953 = vdwg.mxu0
    %954 = vrot.lane.b32.xlu0 %v810, 64
    %v955 = vpop.permute.xlu0 %954
    %v957 = vsel %vm299, %v910, 0
    %v960 = vsel %vm353, %v955, 0
    %962 = vmatpush.bf16.msra.mxu0 0
    %963 = vmatpush.bf16.msra.mxu0 0
    %964 = vmatpush.bf16.msra.mxu0 0
    %965 = vmatpush.bf16.msra.mxu0 0
    %966 = vmatpush.bf16.msra.mxu0 0
    %967 = vmatpush.bf16.msra.mxu0 0
    %968 = vmatpush.bf16.msra.mxu0 0
    %969 = vmatpush.bf16.msra.mxu0 %v960
    %970 = vmatmul.bf16.gmra.mxu0 %v957
    %v971 = vpop.f32.mrf.mxu0
    %v972 = vadd.f32 0.0, %v971
    %v973 = vpop.f32.mrf.mxu0
    %974 = vdwg.mxu0
    %975 = vrot.lane.b32.xlu0 %v834, 64
    %v976 = vpop.permute.xlu0 %975
    %v978 = vsel %vm299, %v911, 0
    %v981 = vsel %vm353, %v976, 0
    %983 = vmatpush.bf16.msra.mxu0 0
    %984 = vmatpush.bf16.msra.mxu0 0
    %985 = vmatpush.bf16.msra.mxu0 0
    %986 = vmatpush.bf16.msra.mxu0 0
    %987 = vmatpush.bf16.msra.mxu0 0
    %988 = vmatpush.bf16.msra.mxu0 0
    %989 = vmatpush.bf16.msra.mxu0 0
    %990 = vmatpush.bf16.msra.mxu0 %v981
    %991 = vmatmul.bf16.gmra.mxu0 %v978
    %v992 = vpop.f32.mrf.mxu0
    %v993 = vadd.f32 0.0, %v992
    %v994 = vpop.f32.mrf.mxu0
    %995 = vdwg.mxu0
    %998 = vrot.lane.b32.xlu0 %v972, 16
    %v999 = vpop.permute.xlu0 %998
    %1000 = vrot.lane.b32.xlu0 %v993, 16
    %v1001 = vpop.permute.xlu0 %1000
    %v1004 = vsel %vm193, %v930, %v999
    %v1005 = vsel %vm193, %v951, %v1001
    %v1006 = vpack.c.bf16 %v1005, %v1004
    %s1007 = scalar_lea.vmem %s6, 16
    %v1008 = vld [vmem:[%s1007] sm:$0xf]
    %v1009 = vld [vmem:[%s1007 + $0x4] sm:$0xf]
    %v1010 = vld [vmem:[%s1007 + $0x8] sm:$0xf]
    %v1011 = vld [vmem:[%s1007 + $0xc] sm:$0xf]
    %s1012 = scalar_lea.vmem %s7, 1
    %v1013 = vld [vmem:[%s1012] sm:$0x1]
    %v1015 = vperm.slane %v1013, 0
    %v1021 = vunpack.c.l.b16 %v1008
    %v1022 = vunpack.c.l.b16 %v1009
    %v1023 = vunpack.c.l.b16 %v1010
    %v1024 = vunpack.c.l.b16 %v1011
    %v1025 = vpack.c.b16 %v1022, %v1021
    %v1026 = vpack.c.b16 %v1024, %v1023
    %v1030 = vsel %vm74, %v1006, 0
    %1032 = vmatpush.bf16.msra.mxu0 0
    %1033 = vmatpush.bf16.msra.mxu0 0
    %1034 = vmatpush.bf16.msra.mxu0 0
    %1035 = vmatpush.bf16.msra.mxu0 0
    %1036 = vmatpush.bf16.msra.mxu0 0
    %1037 = vmatpush.bf16.msra.mxu0 0
    %1038 = vmatpush.bf16.msra.mxu0 %v1026
    %1039 = vmatpush.bf16.msra.mxu0 %v1025
    %1040 = vmatmul.bf16.gmra.mxu0 %v1030
    %v1041 = vpop.f32.mrf.mxu0
    %v1042 = vadd.f32 %v1015, %v1041
    %v1043 = vpop.f32.mrf.mxu0
    %v1044 = vadd.f32 %v1015, %v1043
    %1045 = vdwg.mxu0
    %v1046 = vadd.f32 %v706, %v1042
    %v1047 = vadd.f32 %v707, %v1044
    %s1048 = scalar_lea.vmem %s8, 1
    %v1049 = vld [vmem:[%s1048] sm:$0x1]
    %s1050 = scalar_lea.vmem %s9, 1
    %v1051 = vld [vmem:[%s1050] sm:$0x1]
    %v1052 = vsel %vm74, %v1046, 0.0
    %1053 = vadd.xlane.f32.xlu0 %v1052
    %v1054 = vpop.xlane.xlu0 %1053
    %v1055 = vsel %vm74, %v1047, 0.0
    %1056 = vadd.xlane.f32.xlu0 %v1055
    %v1057 = vpop.xlane.xlu0 %1056
    %v1058 = vmul.f32 %v1054, %v87
    %v1059 = vmul.f32 %v1057, %v87
    %v1060 = vsub.f32 %v1046, %v1058
    %v1061 = vsub.f32 %v1047, %v1059
    %v1062 = vmul.f32 %v1060, %v1060
    %v1063 = vmul.f32 %v1061, %v1061
    %v1064 = vsel %vm74, %v1062, 0.0
    %1065 = vadd.xlane.f32.xlu0 %v1064
    %v1066 = vpop.xlane.xlu0 %1065
    %v1067 = vsel %vm74, %v1063, 0.0
    %1068 = vadd.xlane.f32.xlu0 %v1067
    %v1069 = vpop.xlane.xlu0 %1068
    %v1070 = vmul.f32 %v1066, %v87
    %v1071 = vmul.f32 %v1069, %v87
    %v1072 = vadd.f32 %v1070, 1e-12
    %v1073 = vadd.f32 %v1071, 1e-12
    %v1074 = vrsqrt.pop %v1072
    %v1075 = vmul.f32 %v1074, %v1072
    %v1076 = vmul.f32 %v1075, %v1074
    %v1077 = vmul.f32 0.5, %v1076
    %v1078 = vsub.f32 1.5, %v1077
    %v1079 = vmul.f32 %v1074, %v1078
    %vm1080 = vweird.f32 %v1072
    %vm1081 = vweird.f32 %v1074
    %vm1082 = vmor %vm1080, %vm1081
    %v1083 = vsel %vm1082, %v1074, %v1079
    %v1084 = vrsqrt.pop %v1073
    %v1085 = vmul.f32 %v1084, %v1073
    %v1086 = vmul.f32 %v1085, %v1084
    %v1087 = vmul.f32 0.5, %v1086
    %v1088 = vsub.f32 1.5, %v1087
    %v1089 = vmul.f32 %v1084, %v1088
    %vm1090 = vweird.f32 %v1073
    %vm1091 = vweird.f32 %v1084
    %vm1092 = vmor %vm1090, %vm1091
    %v1093 = vsel %vm1092, %v1084, %v1089
    %v1094 = vmul.f32 %v1060, %v1083
    %v1095 = vmul.f32 %v1061, %v1093
    %v1097 = vperm.slane %v1049, 0
    %v1099 = vmul.f32 %v1094, %v1097
    %v1100 = vmul.f32 %v1095, %v1097
    %v1102 = vperm.slane %v1051, 0
    %v1104 = vadd.f32 %v1099, %v1102
    %v1105 = vadd.f32 %v1100, %v1102
    %v1106 = vpack.c.bf16 %v1105, %v1104
    %s1107 = scalar_lea.vmem %s10, 16
    %v1108 = vld [vmem:[%s1107] sm:$0xf]
    %v1109 = vld [vmem:[%s1107 + $0x4] sm:$0xf]
    %v1110 = vld [vmem:[%s1107 + $0x8] sm:$0xf]
    %v1111 = vld [vmem:[%s1107 + $0xc] sm:$0xf]
    %s1112 = scalar_lea.vmem %s11, 1
    %v1113 = vld [vmem:[%s1112] sm:$0x1]
    %v1115 = vperm.slane %v1113, 0
    %v1121 = vunpack.c.l.b16 %v1108
    %v1122 = vunpack.c.l.b16 %v1109
    %v1123 = vunpack.c.l.b16 %v1110
    %v1124 = vunpack.c.l.b16 %v1111
    %v1125 = vpack.c.b16 %v1122, %v1121
    %v1126 = vpack.c.b16 %v1124, %v1123
    %v1130 = vsel %vm74, %v1106, 0
    %1132 = vmatpush.bf16.msra.mxu0 0
    %1133 = vmatpush.bf16.msra.mxu0 0
    %1134 = vmatpush.bf16.msra.mxu0 0
    %1135 = vmatpush.bf16.msra.mxu0 0
    %1136 = vmatpush.bf16.msra.mxu0 0
    %1137 = vmatpush.bf16.msra.mxu0 0
    %1138 = vmatpush.bf16.msra.mxu0 %v1126
    %1139 = vmatpush.bf16.msra.mxu0 %v1125
    %1140 = vmatmul.bf16.gmra.mxu0 %v1130
    %v1141 = vpop.f32.mrf.mxu0
    %v1142 = vadd.f32 %v1115, %v1141
    %v1143 = vpop.f32.mrf.mxu0
    %v1144 = vadd.f32 %v1115, %v1143
    %1145 = vdwg.mxu0
    %v1146 = vmul.f32 %v1142, 0.5
    %v1147 = vmul.f32 %v1144, 0.5
    %v1148 = vmul.f32 %v1142, 0.044715
    %v1149 = vmul.f32 %v1144, 0.044715
    %v1150 = vmul.f32 %v1148, %v1142
    %v1151 = vmul.f32 %v1149, %v1144
    %v1152 = vmul.f32 %v1150, %v1142
    %v1153 = vmul.f32 %v1151, %v1144
    %v1154 = vadd.f32 %v1142, %v1152
    %v1155 = vadd.f32 %v1144, %v1153
    %v1156 = vmul.f32 %v1154, 0.7978846
    %v1157 = vmul.f32 %v1155, 0.7978846
    %v1158 = vtanh.pop %v1156
    %v1159 = vtanh.pop %v1157
    %v1160 = vadd.f32 %v1158, 1.0
    %v1161 = vadd.f32 %v1159, 1.0
    %v1162 = vmul.f32 %v1146, %v1160
    %v1163 = vmul.f32 %v1147, %v1161
    %v1164 = vpack.c.bf16 %v1163, %v1162
    %s1165 = scalar_lea.vmem %s12, 32
    %v1166 = vld [vmem:[%s1165] sm:$0xf]
    %v1167 = vld [vmem:[%s1165 + $0x4] sm:$0xf]
    %v1168 = vld [vmem:[%s1165 + $0x8] sm:$0xf]
    %v1169 = vld [vmem:[%s1165 + $0xc] sm:$0xf]
    %v1170 = vld [vmem:[%s1165 + $0x10] sm:$0xf]
    %v1171 = vld [vmem:[%s1165 + $0x14] sm:$0xf]
    %v1172 = vld [vmem:[%s1165 + $0x18] sm:$0xf]
    %v1173 = vld [vmem:[%s1165 + $0x1c] sm:$0xf]
    %s1174 = scalar_lea.vmem %s13, 1
    %v1175 = vld [vmem:[%s1174] sm:$0x1]
    %v1177 = vperm.slane %v1175, 0
    %v1187 = vunpack.c.l.b16 %v1166
    %v1188 = vunpack.c.l.b16 %v1167
    %v1189 = vunpack.c.l.b16 %v1168
    %v1190 = vunpack.c.l.b16 %v1169
    %v1191 = vunpack.c.l.b16 %v1170
    %v1192 = vunpack.c.l.b16 %v1171
    %v1193 = vunpack.c.l.b16 %v1172
    %v1194 = vunpack.c.l.b16 %v1173
    %v1195 = vpack.c.b16 %v1188, %v1187
    %v1196 = vpack.c.b16 %v1190, %v1189
    %v1197 = vpack.c.b16 %v1192, %v1191
    %v1198 = vpack.c.b16 %v1194, %v1193
    %v1204 = vsel %vm632, %v1164, 0
    %1206 = vmatpush.bf16.msra.mxu0 0
    %1207 = vmatpush.bf16.msra.mxu0 0
    %1208 = vmatpush.bf16.msra.mxu0 0
    %1209 = vmatpush.bf16.msra.mxu0 0
    %1210 = vmatpush.bf16.msra.mxu0 %v1198
    %1211 = vmatpush.bf16.msra.mxu0 %v1197
    %1212 = vmatpush.bf16.msra.mxu0 %v1196
    %1213 = vmatpush.bf16.msra.mxu0 %v1195
    %1214 = vmatmul.bf16.gmra.mxu0 %v1204
    %v1215 = vpop.f32.mrf.mxu0
    %v1216 = vadd.f32 %v1177, %v1215
    %v1217 = vpop.f32.mrf.mxu0
    %v1218 = vadd.f32 %v1177, %v1217
    %1219 = vdwg.mxu0
    %v1220 = vadd.f32 %v1104, %v1216
    %v1221 = vadd.f32 %v1105, %v1218
    %s1222 = scalar_lea.vmem %s14, 1
    %v1223 = vld [vmem:[%s1222] sm:$0x1]
    %s1224 = scalar_lea.vmem %s15, 1
    %v1225 = vld [vmem:[%s1224] sm:$0x1]
    %v1226 = vsel %vm74, %v1220, 0.0
    %1227 = vadd.xlane.f32.xlu0 %v1226
    %v1228 = vpop.xlane.xlu0 %1227
    %v1229 = vsel %vm74, %v1221, 0.0
    %1230 = vadd.xlane.f32.xlu0 %v1229
    %v1231 = vpop.xlane.xlu0 %1230
    %v1232 = vmul.f32 %v1228, %v87
    %v1233 = vmul.f32 %v1231, %v87
    %v1234 = vsub.f32 %v1220, %v1232
    %v1235 = vsub.f32 %v1221, %v1233
    %v1236 = vmul.f32 %v1234, %v1234
    %v1237 = vmul.f32 %v1235, %v1235
    %v1238 = vsel %vm74, %v1236, 0.0
    %1239 = vadd.xlane.f32.xlu0 %v1238
    %v1240 = vpop.xlane.xlu0 %1239
    %v1241 = vsel %vm74, %v1237, 0.0
    %1242 = vadd.xlane.f32.xlu0 %v1241
    %v1243 = vpop.xlane.xlu0 %1242
    %v1244 = vmul.f32 %v1240, %v87
    %v1245 = vmul.f32 %v1243, %v87
    %v1246 = vadd.f32 %v1244, 1e-12
    %v1247 = vadd.f32 %v1245, 1e-12
    %v1248 = vrsqrt.pop %v1246
    %v1249 = vmul.f32 %v1248, %v1246
    %v1250 = vmul.f32 %v1249, %v1248
    %v1251 = vmul.f32 0.5, %v1250
    %v1252 = vsub.f32 1.5, %v1251
    %v1253 = vmul.f32 %v1248, %v1252
    %vm1254 = vweird.f32 %v1246
    %vm1255 = vweird.f32 %v1248
    %vm1256 = vmor %vm1254, %vm1255
    %v1257 = vsel %vm1256, %v1248, %v1253
    %v1258 = vrsqrt.pop %v1247
    %v1259 = vmul.f32 %v1258, %v1247
    %v1260 = vmul.f32 %v1259, %v1258
    %v1261 = vmul.f32 0.5, %v1260
    %v1262 = vsub.f32 1.5, %v1261
    %v1263 = vmul.f32 %v1258, %v1262
    %vm1264 = vweird.f32 %v1247
    %vm1265 = vweird.f32 %v1258
    %vm1266 = vmor %vm1264, %vm1265
    %v1267 = vsel %vm1266, %v1258, %v1263
    %v1268 = vmul.f32 %v1234, %v1257
    %v1269 = vmul.f32 %v1235, %v1267
    %v1271 = vperm.slane %v1223, 0
    %v1273 = vmul.f32 %v1268, %v1271
    %v1274 = vmul.f32 %v1269, %v1271
    %v1276 = vperm.slane %v1225, 0
    %v1278 = vadd.f32 %v1273, %v1276
    %v1279 = vadd.f32 %v1274, %v1276
    %v1281 = vrot.slane %v1279, 7
    %vm1283 = vcmask 1040384
    %v1284 = vsel %vm1283, %v1278, %v1281
    %v1285 = vpack.c.bf16 %v1284, %v1284
    %v1286 = vld [vmem:[%s16] sm:$0xf]
    %v1287 = vld [vmem:[%s16 + $0x4] sm:$0xf]
    %v1288 = vld [vmem:[%s16 + $0x8] sm:$0xf]
    %v1289 = vld [vmem:[%s16 + $0xc] sm:$0xf]
    %v1290 = vld [vmem:[%s17] sm:$0x1]
    %v1292 = vperm.slane %v1290, 0
    %v1298 = vunpack.c.l.b16 %v1286
    %v1299 = vunpack.c.l.b16 %v1287
    %v1300 = vunpack.c.l.b16 %v1288
    %v1301 = vunpack.c.l.b16 %v1289
    %v1302 = vpack.c.b16 %v1299, %v1298
    %v1303 = vpack.c.b16 %v1301, %v1300
    %v1307 = vsel %vm74, %v1285, 0
    %1309 = vmatpush.bf16.msra.mxu0 0
    %1310 = vmatpush.bf16.msra.mxu0 0
    %1311 = vmatpush.bf16.msra.mxu0 0
    %1312 = vmatpush.bf16.msra.mxu0 0
    %1313 = vmatpush.bf16.msra.mxu0 0
    %1314 = vmatpush.bf16.msra.mxu0 0
    %1315 = vmatpush.bf16.msra.mxu0 %v1303
    %1316 = vmatpush.bf16.msra.mxu0 %v1302
    %1317 = vmatmul.bf16.gmra.mxu0 %v1307
    %v1318 = vpop.f32.mrf.mxu0
    %v1319 = vadd.f32 %v1292, %v1318
    %v1320 = vpop.f32.mrf.mxu0
    %1321 = vdwg.mxu0
    %v1322 = vtanh.pop %v1319
    %v1323 = vpack.c.bf16 %v1322, %v1322
    %v1324 = vld [vmem:[%s18] sm:$0xf]
    %v1325 = vld [vmem:[%s18 + $0x4] sm:$0xf]
    %v1326 = vld [vmem:[%s18 + $0x8] sm:$0xf]
    %v1327 = vld [vmem:[%s18 + $0xc] sm:$0xf]
    %v1328 = vld [vmem:[%s19] sm:$0x1]
    %v1330 = vperm.slane %v1328, 0
    %v1336 = vunpack.c.l.b16 %v1324
    %v1337 = vunpack.c.l.b16 %v1325
    %v1338 = vunpack.c.l.b16 %v1326
    %v1339 = vunpack.c.l.b16 %v1327
    %v1340 = vpack.c.b16 %v1337, %v1336
    %v1341 = vpack.c.b16 %v1339, %v1338
    %v1345 = vsel %vm74, %v1323, 0
    %1347 = vmatpush.bf16.msra.mxu0 0
    %1348 = vmatpush.bf16.msra.mxu0 0
    %1349 = vmatpush.bf16.msra.mxu0 0
    %1350 = vmatpush.bf16.msra.mxu0 0
    %1351 = vmatpush.bf16.msra.mxu0 0
    %1352 = vmatpush.bf16.msra.mxu0 0
    %1353 = vmatpush.bf16.msra.mxu0 %v1341
    %1354 = vmatpush.bf16.msra.mxu0 %v1340
    %1355 = vmatmul.bf16.gmra.mxu0 %v1345
    %v1356 = vpop.f32.mrf.mxu0
    %v1357 = vadd.f32 %v1330, %v1356
    %v1358 = vpop.f32.mrf.mxu0
    %1359 = vdwg.mxu0
    %vm1360 = vcmask 17408
    %v1361 = vsel %vm1360, %v1357, -inf
    %1362 = vmax.xlane.f32.xlu0 %v1361
    %v1363 = vpop.xlane.xlu0 %1362
    %v1364 = vsub.f32 %v1357, %v1363
    %v1365 = vmul.f32 %v1364, 1.442695
    %v1366 = vpow.pop %v1365
    %v1367 = vsel %vm1360, %v1366, 0.0
    %1368 = vadd.xlane.f32.xlu0 %v1367
    %v1369 = vpop.xlane.xlu0 %1368
    %v1370 = vlog2.pop %v1369
    %v1371 = vmul.f32 %v1370, 0.6931472
    %v1372 = vsub.f32 %v1364, %v1371
    %1373 = vst.msk [vmem:[#allocation2] sm:$0x3] %vm1360, %v1372
    %vm1374 = vcmask 33816
    %v1375 = vsel %vm1374, %v1357, -inf
    %1376 = vmax.xlane.f32.xlu0 %v1375
    %v1377 = vpop.xlane.xlu0 %1376
    %v1378 = vsub.f32 %v1357, %v1377
    %v1379 = vmul.f32 %v1378, 1.442695
    %v1380 = vpow.pop %v1379
    %1382 = vrot.lane.b32.xlu0 %v1380, 125
    %v1383 = vpop.permute.xlu0 %1382
    %vm1385 = vcmask 9216
    %v1386 = vsel %vm1385, %v1383, 0.0
    %1387 = vadd.xlane.f32.xlu0 %v1386
    %v1388 = vpop.xlane.xlu0 %1387
    %v1389 = vlog2.pop %v1388
    %v1390 = vmul.f32 %v1389, 0.6931472
    %v1391 = vsub.f32 %v1378, %v1390
    %1393 = vrot.lane.b32.xlu0 %v1391, 125
    %v1394 = vpop.permute.xlu0 %1393
    %1396 = vst.msk [vmem:[#allocation4] sm:$0x3] %vm1385, %v1394
    // Predicated region
    $region82: #{forward.1} parent=1 // pred_check
      _
    $region83: #{forward.1} parent=1 // pred_check_branch
      %1398 = sbr.rel (0) target = $region85
    $region84: #{forward.1} parent=1 // pred_region
      %1400 = vsyncadd [#allocation3], 0
      %s1402 = sshll.u32 [#allocation2], 4
      %s1403 = int_to_ptr.vmem [resolvable:$true] %s1402
      %s1404 = sshll.u32 %s20, 4
      %s1405 = int_to_ptr.hbm [resolvable:$true] %s1404
      %1407 = dma.vmem_to_hbm [thread:$0]  %s1403, 32, %s1405, [#allocation3]
    $region85: #{forward.1} parent=1 // pred_fallthru
      _
    // Predicated region
    $region86: #{forward.1} parent=1 // pred_check
      _
    $region87: #{forward.1} parent=1 // pred_check_branch
      %1409 = sbr.rel (0) target = $region89
    $region88: #{forward.1} parent=1 // pred_region
      %1411 = vsyncadd [#allocation5], 0
      %s1413 = sshll.u32 [#allocation4], 4
      %s1414 = int_to_ptr.vmem [resolvable:$true] %s1413
      %s1415 = sshll.u32 %s21, 4
      %s1416 = int_to_ptr.hbm [resolvable:$true] %s1415
      %1418 = dma.vmem_to_hbm [thread:$0]  %s1414, 32, %s1416, [#allocation5]
    $region89: #{forward.1} parent=1 // pred_fallthru
      _
    // Predicated region
    $region90: #{forward.1} parent=1 // pred_check
      _
    $region91: #{forward.1} parent=1 // pred_check_branch
      %1420 = sbr.rel (0) target = $region93
    $region92: #{forward.1} parent=1 // pred_region
      %1422 = dma.done [#allocation3], 32
    $region93: #{forward.1} parent=1 // pred_fallthru
      _
    // Predicated region
    $region94: #{forward.1} parent=1 // pred_check
      _
    $region95: #{forward.1} parent=1 // pred_check_branch
      %1424 = sbr.rel (0) target = $region97
    $region96: #{forward.1} parent=1 // pred_region
      %1426 = dma.done [#allocation5], 32
    $region97: #{forward.1} parent=1 // pred_fallthru
      _
    %1427 = vsyncpa [#allocation3], 1
    %1428 = vsyncpa [#allocation5], 1

</llo_original>
